<compile_context>
chip_gen: v7x
topology: tpu7x:2x2x1
jax: 0.10.0
libtpu: 0.0.40
codegen_flags: <defaults>
</compile_context>

<pallas_src>
import functools

import jax
import jax.numpy as jnp
from jax.experimental import pallas as pl
from jax.experimental.pallas import tpu as pltpu


# ----------------------------- fused Pallas kernel -----------------------------

def _fused_forward_kernel(adj_ref, pool_ref, x_ref, pre_w_ref, pre_b_ref,
                          *refs, nlayer):
    """Whole GraphSage forward; all intermediates live in VMEM/vregs.

    refs = [wcat_0, b_0, ..., wcat_{L-1}, b_{L-1},
            post_w, post_b, ro_w, ro_b, out_ref]
    """
    conv_refs = refs[:2 * nlayer]
    post_w_ref, post_b_ref, ro_w_ref, ro_b_ref, out_ref = refs[2 * nlayer:]

    # Adjacency is stored bf16 (halves the O(N^2) DMA bytes). Upcast once and
    # accumulate in f32 so numerics match the f32 reference. For large graphs
    # the activations could also be cast to bf16 for full bf16 MXU rate.
    adj = adj_ref[...].astype(jnp.float32)

    # pre: Linear(nfeat -> nhid)
    h = jnp.dot(x_ref[...], pre_w_ref[...], preferred_element_type=jnp.float32)
    h = h + pre_b_ref[...]

    # SAGEConv(aggr='mean') + ReLU, statically unrolled over layers.
    # lin_r(x) + lin_l(mean_agg(x)) fused as ONE K=2H matmul:
    #   [h | A_mean @ h] @ [[W_r], [W_l]] + b
    for l in range(nlayer):
        wcat_ref = conv_refs[2 * l]
        b_ref = conv_refs[2 * l + 1]
        agg = jnp.dot(adj, h, preferred_element_type=jnp.float32)
        xa = jnp.concatenate([h, agg], axis=-1)           # (NP, 2*HP)
        h = jnp.dot(xa, wcat_ref[...], preferred_element_type=jnp.float32)
        h = jnp.maximum(h + b_ref[...], 0.0)

    # global_add_pool over the resident activations (tiny (GP, NP) matmul).
    g = jnp.dot(pool_ref[...], h, preferred_element_type=jnp.float32)

    # post: Linear + ReLU
    g = jnp.dot(g, post_w_ref[...], preferred_element_type=jnp.float32)
    g = jnp.maximum(g + post_b_ref[...], 0.0)

    # readout + log_softmax. Padded class columns carry a -1e30 bias so they
    # contribute exp()==0; padded-width log_softmax == real log_softmax.
    logits = jnp.dot(g, ro_w_ref[...], preferred_element_type=jnp.float32)
    logits = logits + ro_b_ref[...]
    m = jnp.max(logits, axis=-1, keepdims=True)
    s = logits - m
    lse = jnp.log(jnp.sum(jnp.exp(s), axis=-1, keepdims=True))
    out_ref[...] = (s - lse).astype(out_ref.dtype)


# ----------------------------- wrapper -----------------------------

_VMEM_SPEC = pl.BlockSpec(memory_space=pltpu.VMEM)


def _round_up(n, m):
    return ((n + m - 1) // m) * m


def _pad_to(a, shape):
    pads = [(0, t - s) for s, t in zip(a.shape, shape)]
    return jnp.pad(a, pads)


def graphsage_forward(params, x, adj_mean, pool, nclass):
    """Pad everything lane-dense, run the single fused kernel, slice padding off."""
    n, f = x.shape
    g = pool.shape[0]
    h = params["pre_w"].shape[1]
    nlayer = len(params["convs"])

    NP = _round_up(n, 128)        # N is also the lane axis of adj / pool
    FP = _round_up(f, 128)
    HP = _round_up(h, 128)
    CP = _round_up(nclass, 128)
    GP = _round_up(g, 8)

    x_p = _pad_to(x, (NP, FP))
    adj_p = _pad_to(adj_mean, (NP, NP))                  # bf16 storage
    pool_p = _pad_to(pool, (GP, NP))

    pre_w = _pad_to(params["pre_w"], (FP, HP))
    pre_b = _pad_to(params["pre_b"], (1, HP))

    conv_args = []
    for conv in params["convs"]:
        wr = _pad_to(conv["wr"], (HP, HP))
        wl = _pad_to(conv["wl"], (HP, HP))
        # weight concat done ONCE here (not per kernel iteration):
        # kernel computes [h | agg] @ [[wr],[wl]]
        wcat = jnp.concatenate([wr, wl], axis=0)          # (2*HP, HP)
        bl = _pad_to(conv["bl"], (1, HP))
        conv_args += [wcat, bl]

    post_w = _pad_to(params["post_w"], (HP, HP))
    post_b = _pad_to(params["post_b"], (1, HP))
    ro_w = _pad_to(params["ro_w"], (HP, CP))
    ro_b = _pad_to(params["ro_b"], (1, CP))
    if CP > nclass:
        ro_b = ro_b.at[:, nclass:].set(-1e30)             # kill padded classes

    num_in = 5 + 2 * nlayer + 4
    out_p = pl.pallas_call(
        functools.partial(_fused_forward_kernel, nlayer=nlayer),
        out_shape=jax.ShapeDtypeStruct((GP, CP), jnp.float32),
        in_specs=[_VMEM_SPEC] * num_in,
        out_specs=_VMEM_SPEC,
    )(adj_p, pool_p, x_p, pre_w, pre_b, *conv_args, post_w, post_b, ro_w, ro_b)

    return out_p[:g, :nclass]


# ----------------------------- model params / graph glue -----------------------------

def init_params(key, nfeat, nhid, nclass, nlayer):
    """Deterministic synthetic parameter init (shapes follow the module __init__)."""
    keys = jax.random.split(key, 4 + 3 * nlayer)
    scale = 0.1
    params = {
        "pre_w": scale * jax.random.normal(keys[0], (nfeat, nhid), jnp.float32),
        "pre_b": scale * jax.random.normal(keys[1], (1, nhid), jnp.float32),
        "post_w": scale * jax.random.normal(keys[2], (nhid, nhid), jnp.float32),
        "post_b": scale * jax.random.normal(keys[3], (1, nhid), jnp.float32),
        "convs": [],
    }
    for l in range(nlayer):
        kl, kr, kb = keys[4 + 3 * l: 7 + 3 * l]
        params["convs"].append({
            "wl": scale * jax.random.normal(kl, (nhid, nhid), jnp.float32),
            "wr": scale * jax.random.normal(kr, (nhid, nhid), jnp.float32),
            "bl": scale * jax.random.normal(kb, (1, nhid), jnp.float32),
        })
    params["ro_w"] = scale * jax.random.normal(
        jax.random.fold_in(key, 1234), (nhid, nclass), jnp.float32)
    params["ro_b"] = scale * jax.random.normal(
        jax.random.fold_in(key, 5678), (1, nclass), jnp.float32)
    return params


def build_graph_mats(edge_index, batch, num_nodes, num_graphs):
    """Glue (plain JAX): dense mean-aggregation adjacency (bf16) + add-pool matrix."""
    src, dst = edge_index[0], edge_index[1]
    adj = jnp.zeros((num_nodes, num_nodes), jnp.float32).at[dst, src].add(1.0)
    deg = jnp.sum(adj, axis=1, keepdims=True)
    adj_mean = adj / jnp.maximum(deg, 1.0)   # zero in-degree -> zero row (PyG mean of empty = 0)
    pool = (batch[None, :] == jnp.arange(num_graphs)[:, None]).astype(jnp.float32)
    # store adjacency in bf16: halves the O(N^2) HBM traffic; matmuls accumulate f32
    return adj_mean.astype(jnp.bfloat16), pool


# ----------------------------- pure-JAX reference -----------------------------

def graphsage_reference(params, x, adj_mean, pool):
    with jax.default_matmul_precision("highest"):
        adj = adj_mean.astype(jnp.float32)
        h = x @ params["pre_w"] + params["pre_b"]
        for conv in params["convs"]:
            h = jax.nn.relu(h @ conv["wr"] + (adj @ h) @ conv["wl"] + conv["bl"])
        g = pool @ h
        g = jax.nn.relu(g @ params["post_w"] + params["post_b"])
        out = g @ params["ro_w"] + params["ro_b"]
        return jax.nn.log_softmax(out, axis=1)


# ----------------------------- main -----------------------------

if __name__ == "__main__":
    nfeat, nhid, nclass, nlayer = 16, 32, 4, 2
    num_nodes, num_graphs, num_edges = 64, 4, 128

    key = jax.random.PRNGKey(0)
    k_x, k_src, k_dst, k_p = jax.random.split(key, 4)

    x = jax.random.normal(k_x, (num_nodes, nfeat), jnp.float32)
    # batch: 16 nodes per graph, sorted assignment
    batch = jnp.repeat(jnp.arange(num_graphs), num_nodes // num_graphs)
    # random edges (kept within each graph)
    nodes_per_graph = num_nodes // num_graphs
    e_graph = jax.random.randint(k_src, (num_edges,), 0, num_graphs)
    e_src = jax.random.randint(k_dst, (num_edges,), 0, nodes_per_graph)
    e_dst = jax.random.randint(k_p, (num_edges,), 0, nodes_per_graph)
    edge_index = jnp.stack(
        [e_graph * nodes_per_graph + e_src, e_graph * nodes_per_graph + e_dst], axis=0)

    params = init_params(key, nfeat, nhid, nclass, nlayer)
    adj_mean, pool = build_graph_mats(edge_index, batch, num_nodes, num_graphs)

    out = graphsage_forward(params, x, adj_mean, pool, nclass)
    out = jax.block_until_ready(out)

    ref = graphsage_reference(params, x, adj_mean, pool)
    assert out.shape == (num_graphs, nclass)
    assert jnp.allclose(out, ref, atol=1e-4, rtol=1e-4), "mismatch vs reference"

    print("KERNEL_OK")
</pallas_src>

<mosaic_0001>
module attributes {stable_mosaic.version = 11 : i64} {
  func.func @_fused_forward_kernel(%arg0: memref<128x128xbf16, #tpu.memory_space<vmem>>, %arg1: memref<8x128xf32, #tpu.memory_space<vmem>>, %arg2: memref<128x128xf32, #tpu.memory_space<vmem>>, %arg3: memref<128x128xf32, #tpu.memory_space<vmem>>, %arg4: memref<1x128xf32, #tpu.memory_space<vmem>>, %arg5: memref<256x128xf32, #tpu.memory_space<vmem>>, %arg6: memref<1x128xf32, #tpu.memory_space<vmem>>, %arg7: memref<256x128xf32, #tpu.memory_space<vmem>>, %arg8: memref<1x128xf32, #tpu.memory_space<vmem>>, %arg9: memref<128x128xf32, #tpu.memory_space<vmem>>, %arg10: memref<1x128xf32, #tpu.memory_space<vmem>>, %arg11: memref<128x128xf32, #tpu.memory_space<vmem>>, %arg12: memref<1x128xf32, #tpu.memory_space<vmem>>, %arg13: memref<8x128xf32, #tpu.memory_space<vmem>>) attributes {dimension_semantics = [], scalar_prefetch = 0 : i64, scratch_operands = 0 : i64, tpu.core_type = #tpu.core_type<tc>} {
    %c0 = arith.constant 0 : index
    %c0_0 = arith.constant 0 : index
    %0 = vector.load %arg0[%c0, %c0_0] : memref<128x128xbf16, #tpu.memory_space<vmem>>, vector<128x128xbf16>
    %1 = arith.extf %0 : vector<128x128xbf16> to vector<128x128xf32>
    %c0_1 = arith.constant 0 : index
    %c0_2 = arith.constant 0 : index
    %2 = vector.load %arg2[%c0_1, %c0_2] : memref<128x128xf32, #tpu.memory_space<vmem>>, vector<128x128xf32>
    %c0_3 = arith.constant 0 : index
    %c0_4 = arith.constant 0 : index
    %3 = vector.load %arg3[%c0_3, %c0_4] : memref<128x128xf32, #tpu.memory_space<vmem>>, vector<128x128xf32>
    %cst = arith.constant dense<0.000000e+00> : vector<128x128xf32>
    %4 = tpu.matmul %2, %3, %cst {dimension_numbers = #tpu.dot_dimension_numbers<[1], [0], [0], [1], [0, 0, 1, 1], [], []>} : vector<128x128xf32>, vector<128x128xf32>, vector<128x128xf32> -> vector<128x128xf32>
    %c0_5 = arith.constant 0 : index
    %c0_6 = arith.constant 0 : index
    %5 = vector.load %arg4[%c0_5, %c0_6] : memref<1x128xf32, #tpu.memory_space<vmem>>, vector<1x128xf32>
    %6 = vector.broadcast %5 : vector<1x128xf32> to vector<128x128xf32>
    %7 = arith.addf %4, %6 : vector<128x128xf32>
    %cst_7 = arith.constant dense<0.000000e+00> : vector<128x128xf32>
    %8 = tpu.matmul %1, %7, %cst_7 {dimension_numbers = #tpu.dot_dimension_numbers<[1], [0], [0], [1], [0, 0, 1, 1], [], []>} : vector<128x128xf32>, vector<128x128xf32>, vector<128x128xf32> -> vector<128x128xf32>
    %9 = tpu.concatenate %7, %8 in 1 : vector<128x128xf32>, vector<128x128xf32> -> vector<128x256xf32>
    %c0_8 = arith.constant 0 : index
    %c0_9 = arith.constant 0 : index
    %10 = vector.load %arg5[%c0_8, %c0_9] : memref<256x128xf32, #tpu.memory_space<vmem>>, vector<256x128xf32>
    %cst_10 = arith.constant dense<0.000000e+00> : vector<128x128xf32>
    %11 = tpu.matmul %9, %10, %cst_10 {dimension_numbers = #tpu.dot_dimension_numbers<[1], [0], [0], [1], [0, 0, 1, 1], [], []>} : vector<128x256xf32>, vector<256x128xf32>, vector<128x128xf32> -> vector<128x128xf32>
    %c0_11 = arith.constant 0 : index
    %c0_12 = arith.constant 0 : index
    %12 = vector.load %arg6[%c0_11, %c0_12] : memref<1x128xf32, #tpu.memory_space<vmem>>, vector<1x128xf32>
    %13 = vector.broadcast %12 : vector<1x128xf32> to vector<128x128xf32>
    %14 = arith.addf %11, %13 : vector<128x128xf32>
    %cst_13 = arith.constant 0.000000e+00 : f32
    %15 = vector.broadcast %cst_13 : f32 to vector<128x128xf32>
    %16 = arith.maximumf %14, %15 : vector<128x128xf32>
    %cst_14 = arith.constant dense<0.000000e+00> : vector<128x128xf32>
    %17 = tpu.matmul %1, %16, %cst_14 {dimension_numbers = #tpu.dot_dimension_numbers<[1], [0], [0], [1], [0, 0, 1, 1], [], []>} : vector<128x128xf32>, vector<128x128xf32>, vector<128x128xf32> -> vector<128x128xf32>
    %18 = tpu.concatenate %16, %17 in 1 : vector<128x128xf32>, vector<128x128xf32> -> vector<128x256xf32>
    %c0_15 = arith.constant 0 : index
    %c0_16 = arith.constant 0 : index
    %19 = vector.load %arg7[%c0_15, %c0_16] : memref<256x128xf32, #tpu.memory_space<vmem>>, vector<256x128xf32>
    %cst_17 = arith.constant dense<0.000000e+00> : vector<128x128xf32>
    %20 = tpu.matmul %18, %19, %cst_17 {dimension_numbers = #tpu.dot_dimension_numbers<[1], [0], [0], [1], [0, 0, 1, 1], [], []>} : vector<128x256xf32>, vector<256x128xf32>, vector<128x128xf32> -> vector<128x128xf32>
    %c0_18 = arith.constant 0 : index
    %c0_19 = arith.constant 0 : index
    %21 = vector.load %arg8[%c0_18, %c0_19] : memref<1x128xf32, #tpu.memory_space<vmem>>, vector<1x128xf32>
    %22 = vector.broadcast %21 : vector<1x128xf32> to vector<128x128xf32>
    %23 = arith.addf %20, %22 : vector<128x128xf32>
    %cst_20 = arith.constant 0.000000e+00 : f32
    %24 = vector.broadcast %cst_20 : f32 to vector<128x128xf32>
    %25 = arith.maximumf %23, %24 : vector<128x128xf32>
    %c0_21 = arith.constant 0 : index
    %c0_22 = arith.constant 0 : index
    %26 = vector.load %arg1[%c0_21, %c0_22] : memref<8x128xf32, #tpu.memory_space<vmem>>, vector<8x128xf32>
    %cst_23 = arith.constant dense<0.000000e+00> : vector<8x128xf32>
    %27 = tpu.matmul %26, %25, %cst_23 {dimension_numbers = #tpu.dot_dimension_numbers<[1], [0], [0], [1], [0, 0, 1, 1], [], []>} : vector<8x128xf32>, vector<128x128xf32>, vector<8x128xf32> -> vector<8x128xf32>
    %c0_24 = arith.constant 0 : index
    %c0_25 = arith.constant 0 : index
    %28 = vector.load %arg9[%c0_24, %c0_25] : memref<128x128xf32, #tpu.memory_space<vmem>>, vector<128x128xf32>
    %cst_26 = arith.constant dense<0.000000e+00> : vector<8x128xf32>
    %29 = tpu.matmul %27, %28, %cst_26 {dimension_numbers = #tpu.dot_dimension_numbers<[1], [0], [0], [1], [0, 0, 1, 1], [], []>} : vector<8x128xf32>, vector<128x128xf32>, vector<8x128xf32> -> vector<8x128xf32>
    %c0_27 = arith.constant 0 : index
    %c0_28 = arith.constant 0 : index
    %30 = vector.load %arg10[%c0_27, %c0_28] : memref<1x128xf32, #tpu.memory_space<vmem>>, vector<1x128xf32>
    %31 = vector.broadcast %30 : vector<1x128xf32> to vector<8x128xf32>
    %32 = arith.addf %29, %31 : vector<8x128xf32>
    %cst_29 = arith.constant 0.000000e+00 : f32
    %33 = vector.broadcast %cst_29 : f32 to vector<8x128xf32>
    %34 = arith.maximumf %32, %33 : vector<8x128xf32>
    %c0_30 = arith.constant 0 : index
    %c0_31 = arith.constant 0 : index
    %35 = vector.load %arg11[%c0_30, %c0_31] : memref<128x128xf32, #tpu.memory_space<vmem>>, vector<128x128xf32>
    %cst_32 = arith.constant dense<0.000000e+00> : vector<8x128xf32>
    %36 = tpu.matmul %34, %35, %cst_32 {dimension_numbers = #tpu.dot_dimension_numbers<[1], [0], [0], [1], [0, 0, 1, 1], [], []>} : vector<8x128xf32>, vector<128x128xf32>, vector<8x128xf32> -> vector<8x128xf32>
    %c0_33 = arith.constant 0 : index
    %c0_34 = arith.constant 0 : index
    %37 = vector.load %arg12[%c0_33, %c0_34] : memref<1x128xf32, #tpu.memory_space<vmem>>, vector<1x128xf32>
    %38 = vector.broadcast %37 : vector<1x128xf32> to vector<8x128xf32>
    %39 = arith.addf %36, %38 : vector<8x128xf32>
    %cst_35 = arith.constant dense<0xFF800000> : vector<8xf32>
    %40 = vector.multi_reduction <maximumf>, %39, %cst_35 [1] : vector<8x128xf32> to vector<8xf32>
    %41 = vector.shape_cast %40 : vector<8xf32> to vector<8x1xf32>
    %42 = vector.broadcast %41 : vector<8x1xf32> to vector<8x128xf32>
    %43 = arith.subf %39, %42 : vector<8x128xf32>
    %44 = math.exp %43 : vector<8x128xf32>
    %cst_36 = arith.constant dense<0.000000e+00> : vector<8xf32>
    %45 = vector.multi_reduction <add>, %44, %cst_36 [1] : vector<8x128xf32> to vector<8xf32>
    %46 = vector.shape_cast %45 : vector<8xf32> to vector<8x1xf32>
    %47 = math.log %46 : vector<8x1xf32>
    %48 = vector.broadcast %47 : vector<8x1xf32> to vector<8x128xf32>
    %49 = arith.subf %43, %48 : vector<8x128xf32>
    %c0_37 = arith.constant 0 : index
    %c0_38 = arith.constant 0 : index
    %50 = vector.load %arg13[%c0_37, %c0_38] : memref<8x128xf32, #tpu.memory_space<vmem>>, vector<8x128xf32>
    tpu.vector_store %arg13[%c0_37, %c0_38], %49 {strides = array<i32>} : memref<8x128xf32, #tpu.memory_space<vmem>>, vector<8x128xf32>,
    return
  }
}

</mosaic_0001>

<llo_original>
// kernel: tpu_custom_call.1
$region0: #{tpu_custom_call.1}
  #allocation0 [shape = 'u32[]', space=smem, size = 0x4, offset = 0x4, fixed_abs, tag = 'smem constant byte address 0x4 - core index']
  #allocation1 [shape = 'u32[144,128]{1,0:T(1,128)}', space=vmem, size = 0x12000, scoped, tag = 'internal scratch']
  %s0 = inlined_call_operand.hbm [shape: bf16[128,128], index: 0, kind: input, shape index: {}]
  %s1 = inlined_call_operand.hbm [shape: f32[8,128], index: 1, kind: input, shape index: {}]
  %s2 = inlined_call_operand.hbm [shape: f32[128,128], index: 2, kind: input, shape index: {}]
  %s3 = inlined_call_operand.hbm [shape: f32[128,128], index: 3, kind: input, shape index: {}]
  %s4 = inlined_call_operand.vmem [shape: f32[1,128], index: 4, kind: input, shape index: {}]
  %s5 = inlined_call_operand.hbm [shape: f32[256,128], index: 5, kind: input, shape index: {}]
  %s6 = inlined_call_operand.vmem [shape: f32[1,128], index: 6, kind: input, shape index: {}]
  %s7 = inlined_call_operand.hbm [shape: f32[256,128], index: 7, kind: input, shape index: {}]
  %s8 = inlined_call_operand.vmem [shape: f32[1,128], index: 8, kind: input, shape index: {}]
  %s9 = inlined_call_operand.hbm [shape: f32[128,128], index: 9, kind: input, shape index: {}]
  %s10 = inlined_call_operand.vmem [shape: f32[1,128], index: 10, kind: input, shape index: {}]
  %s11 = inlined_call_operand.hbm [shape: f32[128,128], index: 11, kind: input, shape index: {}]
  %s12 = inlined_call_operand.vmem [shape: f32[1,128], index: 12, kind: input, shape index: {}]
  %s13 = inlined_call_operand.hbm [shape: f32[8,128], index: 13, kind: output, shape index: {}]
  %s14 = sld [smem:[#allocation0]]
  $region94: #{tpu_custom_call.1} parent=0
    _
  %s16 = ssub.s32 1, %s14
  %s17 = scalar_select 0, %s16, %s14
  $region1: #{tpu_custom_call.1} parent=0
    #allocation2 [shape = 'u8[32768]{0}', space=vmem, size = 0x8000, scoped, tag = 'input window, operand 0, single buffered']
    #allocation3 [shape = 's32[1]{0}', space=sflag, size = 0x4, scoped, tag = 'scoped memory for tpu_custom_call.1']
    #allocation4 [shape = 's32[1]{0}', space=sflag, size = 0x4, scoped, tag = 'scoped memory for tpu_custom_call.1']
    #allocation5 [shape = 'u8[4096]{0}', space=vmem, size = 0x1000, scoped, tag = 'input window, operand 1, single buffered']
    #allocation6 [shape = 's32[1]{0}', space=sflag, size = 0x4, scoped, tag = 'scoped memory for tpu_custom_call.1']
    #allocation7 [shape = 'u8[65536]{0}', space=vmem, size = 0x10000, scoped, tag = 'input window, operand 2, single buffered']
    #allocation8 [shape = 'u8[65536]{0}', space=vmem, size = 0x10000, scoped, tag = 'input window, operand 3, single buffered']
    #allocation9 [shape = 's32[1]{0}', space=sflag, size = 0x4, scoped, tag = 'scoped memory for tpu_custom_call.1']
    #allocation10 [shape = 'u8[131072]{0}', space=vmem, size = 0x20000, scoped, tag = 'input window, operand 5, single buffered']
    #allocation11 [shape = 'u8[131072]{0}', space=vmem, size = 0x20000, scoped, tag = 'input window, operand 7, single buffered']
    #allocation12 [shape = 's32[1]{0}', space=sflag, size = 0x4, scoped, tag = 'scoped memory for tpu_custom_call.1']
    #allocation13 [shape = 'u8[65536]{0}', space=vmem, size = 0x10000, scoped, tag = 'input window, operand 9, single buffered']
    #allocation14 [shape = 'u8[65536]{0}', space=vmem, size = 0x10000, scoped, tag = 'input window, operand 11, single buffered']
    #allocation15 [shape = 's32[1]{0}', space=sflag, size = 0x4, scoped, tag = 'scoped memory for tpu_custom_call.1']
    #allocation16 [shape = 'u8[4096]{0}', space=vmem, size = 0x1000, scoped, tag = 'output window, operand 0, single buffered']
    %18 = vsyncpa [#allocation3], 0
    %19 = vsyncpa [#allocation6], 0
    %20 = vsyncpa [#allocation9], 0
    %21 = vsyncpa [#allocation12], 0
    %22 = vsyncpa [#allocation15], 0
    %23 = vsyncpa [#allocation4], 0
    // Predicated region
    $region2: #{tpu_custom_call.1} parent=1 // pred_check
      _
    $region3: #{tpu_custom_call.1} parent=1 // pred_check_branch
      %25 = sbr.rel (0) target = $region5
    $region4: #{tpu_custom_call.1} parent=1 // pred_region
      %s27 = ssub.s32 1024, 1024
      %28 = vsyncadd [#allocation3], %s27
      %s29 = sshll.u32 [#allocation2], 4
      %s30 = int_to_ptr.vmem [resolvable:$true] %s29
      %35 = dma.hbm_to_vmem [thread:$0]  %s0, 1024, %s30, [#allocation3], 64, 64, 4
    $region5: #{tpu_custom_call.1} parent=1 // pred_fallthru
      _
    // Predicated region
    $region6: #{tpu_custom_call.1} parent=1 // pred_check
      _
    $region7: #{tpu_custom_call.1} parent=1 // pred_check_branch
      %37 = sbr.rel (0) target = $region9
    $region8: #{tpu_custom_call.1} parent=1 // pred_region
      %s39 = ssub.s32 128, 128
      %40 = vsyncadd [#allocation6], %s39
      %s42 = sshll.u32 [#allocation5], 4
      %s43 = int_to_ptr.vmem [resolvable:$true] %s42
      %45 = dma.hbm_to_vmem [thread:$0]  %s1, 128, %s43, [#allocation6]
    $region9: #{tpu_custom_call.1} parent=1 // pred_fallthru
      _
    // Predicated region
    $region10: #{tpu_custom_call.1} parent=1 // pred_check
      _
    $region11: #{tpu_custom_call.1} parent=1 // pred_check_branch
      %47 = sbr.rel (0) target = $region13
    $region12: #{tpu_custom_call.1} parent=1 // pred_region
      %s49 = ssub.s32 2048, 2048
      %50 = vsyncadd [#allocation6], %s49
      %s51 = sshll.u32 [#allocation7], 4
      %s52 = int_to_ptr.vmem [resolvable:$true] %s51
      %57 = dma.hbm_to_vmem [thread:$0]  %s2, 2048, %s52, [#allocation6], 128, 128, 8
    $region13: #{tpu_custom_call.1} parent=1 // pred_fallthru
      _
    // Predicated region
    $region14: #{tpu_custom_call.1} parent=1 // pred_check
      _
    $region15: #{tpu_custom_call.1} parent=1 // pred_check_branch
      %59 = sbr.rel (0) target = $region17
    $region16: #{tpu_custom_call.1} parent=1 // pred_region
      %s61 = ssub.s32 2048, 2048
      %62 = vsyncadd [#allocation9], %s61
      %s63 = sshll.u32 [#allocation8], 4
      %s64 = int_to_ptr.vmem [resolvable:$true] %s63
      %69 = dma.hbm_to_vmem [thread:$0]  %s3, 2048, %s64, [#allocation9], 128, 128, 8
    $region17: #{tpu_custom_call.1} parent=1 // pred_fallthru
      _
    // Predicated region
    $region18: #{tpu_custom_call.1} parent=1 // pred_check
      _
    $region19: #{tpu_custom_call.1} parent=1 // pred_check_branch
      %71 = sbr.rel (0) target = $region21
    $region20: #{tpu_custom_call.1} parent=1 // pred_region
      _
    $region21: #{tpu_custom_call.1} parent=1 // pred_fallthru
      _
    // Predicated region
    $region22: #{tpu_custom_call.1} parent=1 // pred_check
      _
    $region23: #{tpu_custom_call.1} parent=1 // pred_check_branch
      %73 = sbr.rel (0) target = $region25
    $region24: #{tpu_custom_call.1} parent=1 // pred_region
      %s75 = ssub.s32 4096, 4096
      %76 = vsyncadd [#allocation9], %s75
      %s77 = sshll.u32 [#allocation10], 4
      %s78 = int_to_ptr.vmem [resolvable:$true] %s77
      %83 = dma.hbm_to_vmem [thread:$0]  %s5, 4096, %s78, [#allocation9], 128, 128, 8
    $region25: #{tpu_custom_call.1} parent=1 // pred_fallthru
      _
    // Predicated region
    $region26: #{tpu_custom_call.1} parent=1 // pred_check
      _
    $region27: #{tpu_custom_call.1} parent=1 // pred_check_branch
      %85 = sbr.rel (0) target = $region29
    $region28: #{tpu_custom_call.1} parent=1 // pred_region
      _
    $region29: #{tpu_custom_call.1} parent=1 // pred_fallthru
      _
    // Predicated region
    $region30: #{tpu_custom_call.1} parent=1 // pred_check
      _
    $region31: #{tpu_custom_call.1} parent=1 // pred_check_branch
      %87 = sbr.rel (0) target = $region33
    $region32: #{tpu_custom_call.1} parent=1 // pred_region
      %s89 = ssub.s32 4096, 4096
      %90 = vsyncadd [#allocation12], %s89
      %s91 = sshll.u32 [#allocation11], 4
      %s92 = int_to_ptr.vmem [resolvable:$true] %s91
      %97 = dma.hbm_to_vmem [thread:$0]  %s7, 4096, %s92, [#allocation12], 128, 128, 8
    $region33: #{tpu_custom_call.1} parent=1 // pred_fallthru
      _
    // Predicated region
    $region34: #{tpu_custom_call.1} parent=1 // pred_check
      _
    $region35: #{tpu_custom_call.1} parent=1 // pred_check_branch
      %99 = sbr.rel (0) target = $region37
    $region36: #{tpu_custom_call.1} parent=1 // pred_region
      _
    $region37: #{tpu_custom_call.1} parent=1 // pred_fallthru
      _
    // Predicated region
    $region38: #{tpu_custom_call.1} parent=1 // pred_check
      _
    $region39: #{tpu_custom_call.1} parent=1 // pred_check_branch
      %101 = sbr.rel (0) target = $region41
    $region40: #{tpu_custom_call.1} parent=1 // pred_region
      %s103 = ssub.s32 2048, 2048
      %104 = vsyncadd [#allocation12], %s103
      %s105 = sshll.u32 [#allocation13], 4
      %s106 = int_to_ptr.vmem [resolvable:$true] %s105
      %111 = dma.hbm_to_vmem [thread:$0]  %s9, 2048, %s106, [#allocation12], 128, 128, 8
    $region41: #{tpu_custom_call.1} parent=1 // pred_fallthru
      _
    // Predicated region
    $region42: #{tpu_custom_call.1} parent=1 // pred_check
      _
    $region43: #{tpu_custom_call.1} parent=1 // pred_check_branch
      %113 = sbr.rel (0) target = $region45
    $region44: #{tpu_custom_call.1} parent=1 // pred_region
      _
    $region45: #{tpu_custom_call.1} parent=1 // pred_fallthru
      _
    // Predicated region
    $region46: #{tpu_custom_call.1} parent=1 // pred_check
      _
    $region47: #{tpu_custom_call.1} parent=1 // pred_check_branch
      %115 = sbr.rel (0) target = $region49
    $region48: #{tpu_custom_call.1} parent=1 // pred_region
      %s117 = ssub.s32 2048, 2048
      %118 = vsyncadd [#allocation15], %s117
      %s119 = sshll.u32 [#allocation14], 4
      %s120 = int_to_ptr.vmem [resolvable:$true] %s119
      %125 = dma.hbm_to_vmem [thread:$0]  %s11, 2048, %s120, [#allocation15], 128, 128, 8
    $region49: #{tpu_custom_call.1} parent=1 // pred_fallthru
      _
    // Predicated region
    $region50: #{tpu_custom_call.1} parent=1 // pred_check
      _
    $region51: #{tpu_custom_call.1} parent=1 // pred_check_branch
      %127 = sbr.rel (0) target = $region53
    $region52: #{tpu_custom_call.1} parent=1 // pred_region
      _
    $region53: #{tpu_custom_call.1} parent=1 // pred_fallthru
      _
    // Predicated region
    $region54: #{tpu_custom_call.1} parent=1 // pred_check
      _
    $region55: #{tpu_custom_call.1} parent=1 // pred_check_branch
      %129 = sbr.rel (0) target = $region57
    $region56: #{tpu_custom_call.1} parent=1 // pred_region
      %130 = dma.done [#allocation3], 1024
    $region57: #{tpu_custom_call.1} parent=1 // pred_fallthru
      _
    // Predicated region
    $region58: #{tpu_custom_call.1} parent=1 // pred_check
      _
    $region59: #{tpu_custom_call.1} parent=1 // pred_check_branch
      %132 = sbr.rel (0) target = $region61
    $region60: #{tpu_custom_call.1} parent=1 // pred_region
      %133 = dma.done [#allocation6], 128
    $region61: #{tpu_custom_call.1} parent=1 // pred_fallthru
      _
    // Predicated region
    $region62: #{tpu_custom_call.1} parent=1 // pred_check
      _
    $region63: #{tpu_custom_call.1} parent=1 // pred_check_branch
      %135 = sbr.rel (0) target = $region65
    $region64: #{tpu_custom_call.1} parent=1 // pred_region
      %136 = dma.done [#allocation6], 2048
    $region65: #{tpu_custom_call.1} parent=1 // pred_fallthru
      _
    // Predicated region
    $region66: #{tpu_custom_call.1} parent=1 // pred_check
      _
    $region67: #{tpu_custom_call.1} parent=1 // pred_check_branch
      %138 = sbr.rel (0) target = $region69
    $region68: #{tpu_custom_call.1} parent=1 // pred_region
      %139 = dma.done [#allocation9], 2048
    $region69: #{tpu_custom_call.1} parent=1 // pred_fallthru
      _
    // Predicated region
    $region70: #{tpu_custom_call.1} parent=1 // pred_check
      _
    $region71: #{tpu_custom_call.1} parent=1 // pred_check_branch
      %141 = sbr.rel (0) target = $region73
    $region72: #{tpu_custom_call.1} parent=1 // pred_region
      %142 = dma.done [#allocation9], 4096
    $region73: #{tpu_custom_call.1} parent=1 // pred_fallthru
      _
    // Predicated region
    $region74: #{tpu_custom_call.1} parent=1 // pred_check
      _
    $region75: #{tpu_custom_call.1} parent=1 // pred_check_branch
      %144 = sbr.rel (0) target = $region77
    $region76: #{tpu_custom_call.1} parent=1 // pred_region
      %145 = dma.done [#allocation12], 4096
    $region77: #{tpu_custom_call.1} parent=1 // pred_fallthru
      _
    // Predicated region
    $region78: #{tpu_custom_call.1} parent=1 // pred_check
      _
    $region79: #{tpu_custom_call.1} parent=1 // pred_check_branch
      %147 = sbr.rel (0) target = $region81
    $region80: #{tpu_custom_call.1} parent=1 // pred_region
      %148 = dma.done [#allocation12], 2048
    $region81: #{tpu_custom_call.1} parent=1 // pred_fallthru
      _
    // Predicated region
    $region82: #{tpu_custom_call.1} parent=1 // pred_check
      _
    $region83: #{tpu_custom_call.1} parent=1 // pred_check_branch
      %150 = sbr.rel (0) target = $region85
    $region84: #{tpu_custom_call.1} parent=1 // pred_region
      %151 = dma.done [#allocation15], 2048
    $region85: #{tpu_custom_call.1} parent=1 // pred_fallthru
      _
    %v152 = vld [vmem:[#allocation2] sm:$0xf]
    %v153 = vld [vmem:[#allocation2 + $0x4] sm:$0xf]
    %v154 = vld [vmem:[#allocation2 + $0x8] sm:$0xf]
    %v155 = vld [vmem:[#allocation2 + $0xc] sm:$0xf]
    %v156 = vld [vmem:[#allocation2 + $0x10] sm:$0xf]
    %v157 = vld [vmem:[#allocation2 + $0x14] sm:$0xf]
    %v158 = vld [vmem:[#allocation2 + $0x18] sm:$0xf]
    %v159 = vld [vmem:[#allocation2 + $0x1c] sm:$0xf]
    %v160 = vld [vmem:[#allocation2 + $0x20] sm:$0xf]
    %v161 = vld [vmem:[#allocation2 + $0x24] sm:$0xf]
    %v162 = vld [vmem:[#allocation2 + $0x28] sm:$0xf]
    %v163 = vld [vmem:[#allocation2 + $0x2c] sm:$0xf]
    %v164 = vld [vmem:[#allocation2 + $0x30] sm:$0xf]
    %v165 = vld [vmem:[#allocation2 + $0x34] sm:$0xf]
    %v166 = vld [vmem:[#allocation2 + $0x38] sm:$0xf]
    %v167 = vld [vmem:[#allocation2 + $0x3c] sm:$0xf]
    %v168 = vunpack.c.l.bf16 %v152
    %v169 = vunpack.c.l.bf16 %v153
    %v170 = vunpack.c.l.bf16 %v154
    %v171 = vunpack.c.l.bf16 %v155
    %v172 = vunpack.c.l.bf16 %v156
    %v173 = vunpack.c.l.bf16 %v157
    %v174 = vunpack.c.l.bf16 %v158
    %v175 = vunpack.c.l.bf16 %v159
    %v176 = vunpack.c.l.bf16 %v160
    %v177 = vunpack.c.l.bf16 %v161
    %v178 = vunpack.c.l.bf16 %v162
    %v179 = vunpack.c.l.bf16 %v163
    %v180 = vunpack.c.l.bf16 %v164
    %v181 = vunpack.c.l.bf16 %v165
    %v182 = vunpack.c.l.bf16 %v166
    %v183 = vunpack.c.l.bf16 %v167
    %v184 = vld [vmem:[#allocation7] sm:$0xff]
    %v185 = vld [vmem:[#allocation7 + $0x8] sm:$0xff]
    %v186 = vld [vmem:[#allocation7 + $0x10] sm:$0xff]
    %v187 = vld [vmem:[#allocation7 + $0x18] sm:$0xff]
    %v188 = vld [vmem:[#allocation7 + $0x20] sm:$0xff]
    %v189 = vld [vmem:[#allocation7 + $0x28] sm:$0xff]
    %v190 = vld [vmem:[#allocation7 + $0x30] sm:$0xff]
    %v191 = vld [vmem:[#allocation7 + $0x38] sm:$0xff]
    %v192 = vld [vmem:[#allocation7 + $0x40] sm:$0xff]
    %v193 = vld [vmem:[#allocation7 + $0x48] sm:$0xff]
    %v194 = vld [vmem:[#allocation7 + $0x50] sm:$0xff]
    %v195 = vld [vmem:[#allocation7 + $0x58] sm:$0xff]
    %v196 = vld [vmem:[#allocation7 + $0x60] sm:$0xff]
    %v197 = vld [vmem:[#allocation7 + $0x68] sm:$0xff]
    %v198 = vld [vmem:[#allocation7 + $0x70] sm:$0xff]
    %v199 = vld [vmem:[#allocation7 + $0x78] sm:$0xff]
    %v200 = vld [vmem:[#allocation8] sm:$0xff]
    %v201 = vld [vmem:[#allocation8 + $0x8] sm:$0xff]
    %v202 = vld [vmem:[#allocation8 + $0x10] sm:$0xff]
    %v203 = vld [vmem:[#allocation8 + $0x18] sm:$0xff]
    %v204 = vld [vmem:[#allocation8 + $0x20] sm:$0xff]
    %v205 = vld [vmem:[#allocation8 + $0x28] sm:$0xff]
    %v206 = vld [vmem:[#allocation8 + $0x30] sm:$0xff]
    %v207 = vld [vmem:[#allocation8 + $0x38] sm:$0xff]
    %v208 = vld [vmem:[#allocation8 + $0x40] sm:$0xff]
    %v209 = vld [vmem:[#allocation8 + $0x48] sm:$0xff]
    %v210 = vld [vmem:[#allocation8 + $0x50] sm:$0xff]
    %v211 = vld [vmem:[#allocation8 + $0x58] sm:$0xff]
    %v212 = vld [vmem:[#allocation8 + $0x60] sm:$0xff]
    %v213 = vld [vmem:[#allocation8 + $0x68] sm:$0xff]
    %v214 = vld [vmem:[#allocation8 + $0x70] sm:$0xff]
    %v215 = vld [vmem:[#allocation8 + $0x78] sm:$0xff]
    %v216 = vld [vmem:[%s4] sm:$0x1]
    %v218 = vlaneseq
    %v219 = vshrl.u32 %v218, 7
    %v220 = vsub.s32 0, %v219
    %v221 = vrot.slane %v216, %v220
    %223 = vmatprep.subr.mxu0 0.0
    %224 = vmatpush1.msra.mxu0 %v200
    %225 = vmatprep.subr.mxu0 0.0
    %226 = vmatpush1.msra.mxu0 %v201
    %227 = vmatprep.subr.mxu0 0.0
    %228 = vmatpush1.msra.mxu0 %v202
    %229 = vmatprep.subr.mxu0 0.0
    %230 = vmatpush1.msra.mxu0 %v203
    %231 = vmatprep.subr.mxu0 0.0
    %232 = vmatpush1.msra.mxu0 %v204
    %233 = vmatprep.subr.mxu0 0.0
    %234 = vmatpush1.msra.mxu0 %v205
    %235 = vmatprep.subr.mxu0 0.0
    %236 = vmatpush1.msra.mxu0 %v206
    %237 = vmatprep.subr.mxu0 0.0
    %238 = vmatpush1.msra.mxu0 %v207
    %239 = vmatprep.subr.mxu0 0.0
    %240 = vmatpush1.msra.mxu0 %v208
    %241 = vmatprep.subr.mxu0 0.0
    %242 = vmatpush1.msra.mxu0 %v209
    %243 = vmatprep.subr.mxu0 0.0
    %244 = vmatpush1.msra.mxu0 %v210
    %245 = vmatprep.subr.mxu0 0.0
    %246 = vmatpush1.msra.mxu0 %v211
    %247 = vmatprep.subr.mxu0 0.0
    %248 = vmatpush1.msra.mxu0 %v212
    %249 = vmatprep.subr.mxu0 0.0
    %250 = vmatpush1.msra.mxu0 %v213
    %251 = vmatprep.subr.mxu0 0.0
    %252 = vmatpush1.msra.mxu0 %v214
    %253 = vmatprep.subr.mxu0 0.0
    %254 = vmatpush1.msra.mxu0 %v215
    %255 = vmatprep.subr.mxu0 0.0
    %256 = vmatpush1.msra.mxu0 0.0
    %257 = vmatprep.subr.mxu0 0.0
    %258 = vmatpush1.msra.mxu0 0.0
    %259 = vmatprep.subr.mxu0 0.0
    %260 = vmatpush1.msra.mxu0 0.0
    %261 = vmatprep.subr.mxu0 0.0
    %262 = vmatpush1.msra.mxu0 0.0
    %263 = vmatprep.subr.mxu0 0.0
    %264 = vmatpush1.msra.mxu0 0.0
    %265 = vmatprep.subr.mxu0 0.0
    %266 = vmatpush1.msra.mxu0 0.0
    %267 = vmatprep.subr.mxu0 0.0
    %268 = vmatpush1.msra.mxu0 0.0
    %269 = vmatprep.subr.mxu0 0.0
    %270 = vmatpush1.msra.mxu0 0.0
    %271 = vmatprep.subr.mxu0 0.0
    %272 = vmatpush1.msra.mxu0 0.0
    %273 = vmatprep.subr.mxu0 0.0
    %274 = vmatpush1.msra.mxu0 0.0
    %275 = vmatprep.subr.mxu0 0.0
    %276 = vmatpush1.msra.mxu0 0.0
    %277 = vmatprep.subr.mxu0 0.0
    %278 = vmatpush1.msra.mxu0 0.0
    %279 = vmatprep.subr.mxu0 0.0
    %280 = vmatpush1.msra.mxu0 0.0
    %281 = vmatprep.subr.mxu0 0.0
    %282 = vmatpush1.msra.mxu0 0.0
    %283 = vmatprep.subr.mxu0 0.0
    %284 = vmatpush1.msra.mxu0 0.0
    %285 = vmatprep.subr.mxu0 0.0
    %286 = vmatpush1.msra.mxu0 0.0
    %287 = vmatprep.mubr.f32.mxu0 0.0
    %288 = vmatmul.mubr.f32.gmra.mrb[0].mxu0 %v184
    %v289 = vpop.f32.mrb[0].mxu0
    %v290 = vadd.f32 %v221, %v289
    %v291 = vpop.f32.mrb[0].mxu0
    %292 = vmatprep.mubr.f32.mxu0 0.0
    %293 = vmatmul.mubr.f32.gmra.mrb[0].mxu0 %v185
    %v294 = vpop.f32.mrb[0].mxu0
    %v295 = vadd.f32 %v221, %v294
    %v296 = vpop.f32.mrb[0].mxu0
    %297 = vmatprep.mubr.f32.mxu0 0.0
    %298 = vmatmul.mubr.f32.gmra.mrb[0].mxu0 %v186
    %v299 = vpop.f32.mrb[0].mxu0
    %v300 = vadd.f32 %v221, %v299
    %v301 = vpop.f32.mrb[0].mxu0
    %302 = vmatprep.mubr.f32.mxu0 0.0
    %303 = vmatmul.mubr.f32.gmra.mrb[0].mxu0 %v187
    %v304 = vpop.f32.mrb[0].mxu0
    %v305 = vadd.f32 %v221, %v304
    %v306 = vpop.f32.mrb[0].mxu0
    %307 = vmatprep.mubr.f32.mxu0 0.0
    %308 = vmatmul.mubr.f32.gmra.mrb[0].mxu0 %v188
    %v309 = vpop.f32.mrb[0].mxu0
    %v310 = vadd.f32 %v221, %v309
    %v311 = vpop.f32.mrb[0].mxu0
    %312 = vmatprep.mubr.f32.mxu0 0.0
    %313 = vmatmul.mubr.f32.gmra.mrb[0].mxu0 %v189
    %v314 = vpop.f32.mrb[0].mxu0
    %v315 = vadd.f32 %v221, %v314
    %v316 = vpop.f32.mrb[0].mxu0
    %317 = vmatprep.mubr.f32.mxu0 0.0
    %318 = vmatmul.mubr.f32.gmra.mrb[0].mxu0 %v190
    %v319 = vpop.f32.mrb[0].mxu0
    %v320 = vadd.f32 %v221, %v319
    %v321 = vpop.f32.mrb[0].mxu0
    %322 = vmatprep.mubr.f32.mxu0 0.0
    %323 = vmatmul.mubr.f32.gmra.mrb[0].mxu0 %v191
    %v324 = vpop.f32.mrb[0].mxu0
    %v325 = vadd.f32 %v221, %v324
    %v326 = vpop.f32.mrb[0].mxu0
    %327 = vmatprep.mubr.f32.mxu0 0.0
    %328 = vmatmul.mubr.f32.gmra.mrb[0].mxu0 %v192
    %v329 = vpop.f32.mrb[0].mxu0
    %v330 = vadd.f32 %v221, %v329
    %v331 = vpop.f32.mrb[0].mxu0
    %332 = vmatprep.mubr.f32.mxu0 0.0
    %333 = vmatmul.mubr.f32.gmra.mrb[0].mxu0 %v193
    %v334 = vpop.f32.mrb[0].mxu0
    %v335 = vadd.f32 %v221, %v334
    %v336 = vpop.f32.mrb[0].mxu0
    %337 = vmatprep.mubr.f32.mxu0 0.0
    %338 = vmatmul.mubr.f32.gmra.mrb[0].mxu0 %v194
    %v339 = vpop.f32.mrb[0].mxu0
    %v340 = vadd.f32 %v221, %v339
    %v341 = vpop.f32.mrb[0].mxu0
    %342 = vmatprep.mubr.f32.mxu0 0.0
    %343 = vmatmul.mubr.f32.gmra.mrb[0].mxu0 %v195
    %v344 = vpop.f32.mrb[0].mxu0
    %v345 = vadd.f32 %v221, %v344
    %v346 = vpop.f32.mrb[0].mxu0
    %347 = vmatprep.mubr.f32.mxu0 0.0
    %348 = vmatmul.mubr.f32.gmra.mrb[0].mxu0 %v196
    %v349 = vpop.f32.mrb[0].mxu0
    %v350 = vadd.f32 %v221, %v349
    %v351 = vpop.f32.mrb[0].mxu0
    %352 = vmatprep.mubr.f32.mxu0 0.0
    %353 = vmatmul.mubr.f32.gmra.mrb[0].mxu0 %v197
    %v354 = vpop.f32.mrb[0].mxu0
    %v355 = vadd.f32 %v221, %v354
    %v356 = vpop.f32.mrb[0].mxu0
    %357 = vmatprep.mubr.f32.mxu0 0.0
    %358 = vmatmul.mubr.f32.gmra.mrb[0].mxu0 %v198
    %v359 = vpop.f32.mrb[0].mxu0
    %v360 = vadd.f32 %v221, %v359
    %v361 = vpop.f32.mrb[0].mxu0
    %362 = vmatprep.mubr.f32.mxu0 0.0
    %363 = vmatmul.mubr.f32.gmra.mrb[0].mxu0 %v199
    %v364 = vpop.f32.mrb[0].mxu0
    %v365 = vadd.f32 %v221, %v364
    %v366 = vpop.f32.mrb[0].mxu0
    %367 = vdwg.mxu0
    %368 = vmatprep.subr.mxu0 0.0
    %369 = vmatpush1.msra.mxu0 %v290
    %370 = vmatprep.subr.mxu0 0.0
    %371 = vmatpush1.msra.mxu0 %v295
    %372 = vmatprep.subr.mxu0 0.0
    %373 = vmatpush1.msra.mxu0 %v300
    %374 = vmatprep.subr.mxu0 0.0
    %375 = vmatpush1.msra.mxu0 %v305
    %376 = vmatprep.subr.mxu0 0.0
    %377 = vmatpush1.msra.mxu0 %v310
    %378 = vmatprep.subr.mxu0 0.0
    %379 = vmatpush1.msra.mxu0 %v315
    %380 = vmatprep.subr.mxu0 0.0
    %381 = vmatpush1.msra.mxu0 %v320
    %382 = vmatprep.subr.mxu0 0.0
    %383 = vmatpush1.msra.mxu0 %v325
    %384 = vmatprep.subr.mxu0 0.0
    %385 = vmatpush1.msra.mxu0 %v330
    %386 = vmatprep.subr.mxu0 0.0
    %387 = vmatpush1.msra.mxu0 %v335
    %388 = vmatprep.subr.mxu0 0.0
    %389 = vmatpush1.msra.mxu0 %v340
    %390 = vmatprep.subr.mxu0 0.0
    %391 = vmatpush1.msra.mxu0 %v345
    %392 = vmatprep.subr.mxu0 0.0
    %393 = vmatpush1.msra.mxu0 %v350
    %394 = vmatprep.subr.mxu0 0.0
    %395 = vmatpush1.msra.mxu0 %v355
    %396 = vmatprep.subr.mxu0 0.0
    %397 = vmatpush1.msra.mxu0 %v360
    %398 = vmatprep.subr.mxu0 0.0
    %399 = vmatpush1.msra.mxu0 %v365
    %400 = vmatprep.subr.mxu0 0.0
    %401 = vmatpush1.msra.mxu0 0.0
    %402 = vmatprep.subr.mxu0 0.0
    %403 = vmatpush1.msra.mxu0 0.0
    %404 = vmatprep.subr.mxu0 0.0
    %405 = vmatpush1.msra.mxu0 0.0
    %406 = vmatprep.subr.mxu0 0.0
    %407 = vmatpush1.msra.mxu0 0.0
    %408 = vmatprep.subr.mxu0 0.0
    %409 = vmatpush1.msra.mxu0 0.0
    %410 = vmatprep.subr.mxu0 0.0
    %411 = vmatpush1.msra.mxu0 0.0
    %412 = vmatprep.subr.mxu0 0.0
    %413 = vmatpush1.msra.mxu0 0.0
    %414 = vmatprep.subr.mxu0 0.0
    %415 = vmatpush1.msra.mxu0 0.0
    %416 = vmatprep.subr.mxu0 0.0
    %417 = vmatpush1.msra.mxu0 0.0
    %418 = vmatprep.subr.mxu0 0.0
    %419 = vmatpush1.msra.mxu0 0.0
    %420 = vmatprep.subr.mxu0 0.0
    %421 = vmatpush1.msra.mxu0 0.0
    %422 = vmatprep.subr.mxu0 0.0
    %423 = vmatpush1.msra.mxu0 0.0
    %424 = vmatprep.subr.mxu0 0.0
    %425 = vmatpush1.msra.mxu0 0.0
    %426 = vmatprep.subr.mxu0 0.0
    %427 = vmatpush1.msra.mxu0 0.0
    %428 = vmatprep.subr.mxu0 0.0
    %429 = vmatpush1.msra.mxu0 0.0
    %430 = vmatprep.subr.mxu0 0.0
    %431 = vmatpush1.msra.mxu0 0.0
    %432 = vmatprep.mubr.f32.mxu0 0.0
    %433 = vmatmul.mubr.f32.gmra.mrb[0].mxu0 %v168
    %v434 = vpop.f32.mrb[0].mxu0
    %v435 = vadd.f32 0.0, %v434
    %v436 = vpop.f32.mrb[0].mxu0
    %437 = vmatprep.mubr.f32.mxu0 0.0
    %438 = vmatmul.mubr.f32.gmra.mrb[0].mxu0 %v169
    %v439 = vpop.f32.mrb[0].mxu0
    %v440 = vadd.f32 0.0, %v439
    %v441 = vpop.f32.mrb[0].mxu0
    %442 = vmatprep.mubr.f32.mxu0 0.0
    %443 = vmatmul.mubr.f32.gmra.mrb[0].mxu0 %v170
    %v444 = vpop.f32.mrb[0].mxu0
    %v445 = vadd.f32 0.0, %v444
    %v446 = vpop.f32.mrb[0].mxu0
    %447 = vmatprep.mubr.f32.mxu0 0.0
    %448 = vmatmul.mubr.f32.gmra.mrb[0].mxu0 %v171
    %v449 = vpop.f32.mrb[0].mxu0
    %v450 = vadd.f32 0.0, %v449
    %v451 = vpop.f32.mrb[0].mxu0
    %452 = vmatprep.mubr.f32.mxu0 0.0
    %453 = vmatmul.mubr.f32.gmra.mrb[0].mxu0 %v172
    %v454 = vpop.f32.mrb[0].mxu0
    %v455 = vadd.f32 0.0, %v454
    %v456 = vpop.f32.mrb[0].mxu0
    %457 = vmatprep.mubr.f32.mxu0 0.0
    %458 = vmatmul.mubr.f32.gmra.mrb[0].mxu0 %v173
    %v459 = vpop.f32.mrb[0].mxu0
    %v460 = vadd.f32 0.0, %v459
    %v461 = vpop.f32.mrb[0].mxu0
    %462 = vmatprep.mubr.f32.mxu0 0.0
    %463 = vmatmul.mubr.f32.gmra.mrb[0].mxu0 %v174
    %v464 = vpop.f32.mrb[0].mxu0
    %v465 = vadd.f32 0.0, %v464
    %v466 = vpop.f32.mrb[0].mxu0
    %467 = vmatprep.mubr.f32.mxu0 0.0
    %468 = vmatmul.mubr.f32.gmra.mrb[0].mxu0 %v175
    %v469 = vpop.f32.mrb[0].mxu0
    %v470 = vadd.f32 0.0, %v469
    %v471 = vpop.f32.mrb[0].mxu0
    %472 = vmatprep.mubr.f32.mxu0 0.0
    %473 = vmatmul.mubr.f32.gmra.mrb[0].mxu0 %v176
    %v474 = vpop.f32.mrb[0].mxu0
    %v475 = vadd.f32 0.0, %v474
    %v476 = vpop.f32.mrb[0].mxu0
    %477 = vmatprep.mubr.f32.mxu0 0.0
    %478 = vmatmul.mubr.f32.gmra.mrb[0].mxu0 %v177
    %v479 = vpop.f32.mrb[0].mxu0
    %v480 = vadd.f32 0.0, %v479
    %v481 = vpop.f32.mrb[0].mxu0
    %482 = vmatprep.mubr.f32.mxu0 0.0
    %483 = vmatmul.mubr.f32.gmra.mrb[0].mxu0 %v178
    %v484 = vpop.f32.mrb[0].mxu0
    %v485 = vadd.f32 0.0, %v484
    %v486 = vpop.f32.mrb[0].mxu0
    %487 = vmatprep.mubr.f32.mxu0 0.0
    %488 = vmatmul.mubr.f32.gmra.mrb[0].mxu0 %v179
    %v489 = vpop.f32.mrb[0].mxu0
    %v490 = vadd.f32 0.0, %v489
    %v491 = vpop.f32.mrb[0].mxu0
    %492 = vmatprep.mubr.f32.mxu0 0.0
    %493 = vmatmul.mubr.f32.gmra.mrb[0].mxu0 %v180
    %v494 = vpop.f32.mrb[0].mxu0
    %v495 = vadd.f32 0.0, %v494
    %v496 = vpop.f32.mrb[0].mxu0
    %497 = vmatprep.mubr.f32.mxu0 0.0
    %498 = vmatmul.mubr.f32.gmra.mrb[0].mxu0 %v181
    %v499 = vpop.f32.mrb[0].mxu0
    %v500 = vadd.f32 0.0, %v499
    %v501 = vpop.f32.mrb[0].mxu0
    %502 = vmatprep.mubr.f32.mxu0 0.0
    %503 = vmatmul.mubr.f32.gmra.mrb[0].mxu0 %v182
    %v504 = vpop.f32.mrb[0].mxu0
    %v505 = vadd.f32 0.0, %v504
    %v506 = vpop.f32.mrb[0].mxu0
    %507 = vmatprep.mubr.f32.mxu0 0.0
    %508 = vmatmul.mubr.f32.gmra.mrb[0].mxu0 %v183
    %v509 = vpop.f32.mrb[0].mxu0
    %v510 = vadd.f32 0.0, %v509
    %v511 = vpop.f32.mrb[0].mxu0
    %512 = vdwg.mxu0
    %v513 = vld [vmem:[#allocation10] sm:$0xff]
    %v514 = vld [vmem:[#allocation10 + $0x8] sm:$0xff]
    %v515 = vld [vmem:[#allocation10 + $0x10] sm:$0xff]
    %v516 = vld [vmem:[#allocation10 + $0x18] sm:$0xff]
    %v517 = vld [vmem:[#allocation10 + $0x20] sm:$0xff]
    %v518 = vld [vmem:[#allocation10 + $0x28] sm:$0xff]
    %v519 = vld [vmem:[#allocation10 + $0x30] sm:$0xff]
    %v520 = vld [vmem:[#allocation10 + $0x38] sm:$0xff]
    %v521 = vld [vmem:[#allocation10 + $0x40] sm:$0xff]
    %v522 = vld [vmem:[#allocation10 + $0x48] sm:$0xff]
    %v523 = vld [vmem:[#allocation10 + $0x50] sm:$0xff]
    %v524 = vld [vmem:[#allocation10 + $0x58] sm:$0xff]
    %v525 = vld [vmem:[#allocation10 + $0x60] sm:$0xff]
    %v526 = vld [vmem:[#allocation10 + $0x68] sm:$0xff]
    %v527 = vld [vmem:[#allocation10 + $0x70] sm:$0xff]
    %v528 = vld [vmem:[#allocation10 + $0x78] sm:$0xff]
    %v529 = vld [vmem:[#allocation10 + $0x80] sm:$0xff]
    %v530 = vld [vmem:[#allocation10 + $0x88] sm:$0xff]
    %v531 = vld [vmem:[#allocation10 + $0x90] sm:$0xff]
    %v532 = vld [vmem:[#allocation10 + $0x98] sm:$0xff]
    %v533 = vld [vmem:[#allocation10 + $0xa0] sm:$0xff]
    %v534 = vld [vmem:[#allocation10 + $0xa8] sm:$0xff]
    %v535 = vld [vmem:[#allocation10 + $0xb0] sm:$0xff]
    %v536 = vld [vmem:[#allocation10 + $0xb8] sm:$0xff]
    %v537 = vld [vmem:[#allocation10 + $0xc0] sm:$0xff]
    %v538 = vld [vmem:[#allocation10 + $0xc8] sm:$0xff]
    %v539 = vld [vmem:[#allocation10 + $0xd0] sm:$0xff]
    %v540 = vld [vmem:[#allocation10 + $0xd8] sm:$0xff]
    %v541 = vld [vmem:[#allocation10 + $0xe0] sm:$0xff]
    %v542 = vld [vmem:[#allocation10 + $0xe8] sm:$0xff]
    %v543 = vld [vmem:[#allocation10 + $0xf0] sm:$0xff]
    %v544 = vld [vmem:[#allocation10 + $0xf8] sm:$0xff]
    %v545 = vld [vmem:[%s6] sm:$0x1]
    %v547 = vlaneseq
    %v548 = vshrl.u32 %v547, 7
    %v549 = vsub.s32 0, %v548
    %v550 = vrot.slane %v545, %v549
    %552 = vmatprep.subr.mxu0 0.0
    %553 = vmatpush1.msra.mxu0 %v513
    %554 = vmatprep.subr.mxu0 0.0
    %555 = vmatpush1.msra.mxu0 %v514
    %556 = vmatprep.subr.mxu0 0.0
    %557 = vmatpush1.msra.mxu0 %v515
    %558 = vmatprep.subr.mxu0 0.0
    %559 = vmatpush1.msra.mxu0 %v516
    %560 = vmatprep.subr.mxu0 0.0
    %561 = vmatpush1.msra.mxu0 %v517
    %562 = vmatprep.subr.mxu0 0.0
    %563 = vmatpush1.msra.mxu0 %v518
    %564 = vmatprep.subr.mxu0 0.0
    %565 = vmatpush1.msra.mxu0 %v519
    %566 = vmatprep.subr.mxu0 0.0
    %567 = vmatpush1.msra.mxu0 %v520
    %568 = vmatprep.subr.mxu0 0.0
    %569 = vmatpush1.msra.mxu0 %v521
    %570 = vmatprep.subr.mxu0 0.0
    %571 = vmatpush1.msra.mxu0 %v522
    %572 = vmatprep.subr.mxu0 0.0
    %573 = vmatpush1.msra.mxu0 %v523
    %574 = vmatprep.subr.mxu0 0.0
    %575 = vmatpush1.msra.mxu0 %v524
    %576 = vmatprep.subr.mxu0 0.0
    %577 = vmatpush1.msra.mxu0 %v525
    %578 = vmatprep.subr.mxu0 0.0
    %579 = vmatpush1.msra.mxu0 %v526
    %580 = vmatprep.subr.mxu0 0.0
    %581 = vmatpush1.msra.mxu0 %v527
    %582 = vmatprep.subr.mxu0 0.0
    %583 = vmatpush1.msra.mxu0 %v528
    %584 = vmatprep.subr.mxu0 0.0
    %585 = vmatpush1.msra.mxu0 %v529
    %586 = vmatprep.subr.mxu0 0.0
    %587 = vmatpush1.msra.mxu0 %v530
    %588 = vmatprep.subr.mxu0 0.0
    %589 = vmatpush1.msra.mxu0 %v531
    %590 = vmatprep.subr.mxu0 0.0
    %591 = vmatpush1.msra.mxu0 %v532
    %592 = vmatprep.subr.mxu0 0.0
    %593 = vmatpush1.msra.mxu0 %v533
    %594 = vmatprep.subr.mxu0 0.0
    %595 = vmatpush1.msra.mxu0 %v534
    %596 = vmatprep.subr.mxu0 0.0
    %597 = vmatpush1.msra.mxu0 %v535
    %598 = vmatprep.subr.mxu0 0.0
    %599 = vmatpush1.msra.mxu0 %v536
    %600 = vmatprep.subr.mxu0 0.0
    %601 = vmatpush1.msra.mxu0 %v537
    %602 = vmatprep.subr.mxu0 0.0
    %603 = vmatpush1.msra.mxu0 %v538
    %604 = vmatprep.subr.mxu0 0.0
    %605 = vmatpush1.msra.mxu0 %v539
    %606 = vmatprep.subr.mxu0 0.0
    %607 = vmatpush1.msra.mxu0 %v540
    %608 = vmatprep.subr.mxu0 0.0
    %609 = vmatpush1.msra.mxu0 %v541
    %610 = vmatprep.subr.mxu0 0.0
    %611 = vmatpush1.msra.mxu0 %v542
    %612 = vmatprep.subr.mxu0 0.0
    %613 = vmatpush1.msra.mxu0 %v543
    %614 = vmatprep.subr.mxu0 0.0
    %615 = vmatpush1.msra.mxu0 %v544
    %616 = vmatprep.mubr.f32.mxu0 %v435
    %617 = vmatmul.mubr.f32.gmra.mrb[0].mxu0 %v290
    %v618 = vpop.f32.mrb[0].mxu0
    %v619 = vadd.f32 %v550, %v618
    %v620 = vpop.f32.mrb[0].mxu0
    %621 = vmatprep.mubr.f32.mxu0 %v440
    %622 = vmatmul.mubr.f32.gmra.mrb[0].mxu0 %v295
    %v623 = vpop.f32.mrb[0].mxu0
    %v624 = vadd.f32 %v550, %v623
    %v625 = vpop.f32.mrb[0].mxu0
    %626 = vmatprep.mubr.f32.mxu0 %v445
    %627 = vmatmul.mubr.f32.gmra.mrb[0].mxu0 %v300
    %v628 = vpop.f32.mrb[0].mxu0
    %v629 = vadd.f32 %v550, %v628
    %v630 = vpop.f32.mrb[0].mxu0
    %631 = vmatprep.mubr.f32.mxu0 %v450
    %632 = vmatmul.mubr.f32.gmra.mrb[0].mxu0 %v305
    %v633 = vpop.f32.mrb[0].mxu0
    %v634 = vadd.f32 %v550, %v633
    %v635 = vpop.f32.mrb[0].mxu0
    %636 = vmatprep.mubr.f32.mxu0 %v455
    %637 = vmatmul.mubr.f32.gmra.mrb[0].mxu0 %v310
    %v638 = vpop.f32.mrb[0].mxu0
    %v639 = vadd.f32 %v550, %v638
    %v640 = vpop.f32.mrb[0].mxu0
    %641 = vmatprep.mubr.f32.mxu0 %v460
    %642 = vmatmul.mubr.f32.gmra.mrb[0].mxu0 %v315
    %v643 = vpop.f32.mrb[0].mxu0
    %v644 = vadd.f32 %v550, %v643
    %v645 = vpop.f32.mrb[0].mxu0
    %646 = vmatprep.mubr.f32.mxu0 %v465
    %647 = vmatmul.mubr.f32.gmra.mrb[0].mxu0 %v320
    %v648 = vpop.f32.mrb[0].mxu0
    %v649 = vadd.f32 %v550, %v648
    %v650 = vpop.f32.mrb[0].mxu0
    %651 = vmatprep.mubr.f32.mxu0 %v470
    %652 = vmatmul.mubr.f32.gmra.mrb[0].mxu0 %v325
    %v653 = vpop.f32.mrb[0].mxu0
    %v654 = vadd.f32 %v550, %v653
    %v655 = vpop.f32.mrb[0].mxu0
    %656 = vmatprep.mubr.f32.mxu0 %v475
    %657 = vmatmul.mubr.f32.gmra.mrb[0].mxu0 %v330
    %v658 = vpop.f32.mrb[0].mxu0
    %v659 = vadd.f32 %v550, %v658
    %v660 = vpop.f32.mrb[0].mxu0
    %661 = vmatprep.mubr.f32.mxu0 %v480
    %662 = vmatmul.mubr.f32.gmra.mrb[0].mxu0 %v335
    %v663 = vpop.f32.mrb[0].mxu0
    %v664 = vadd.f32 %v550, %v663
    %v665 = vpop.f32.mrb[0].mxu0
    %666 = vmatprep.mubr.f32.mxu0 %v485
    %667 = vmatmul.mubr.f32.gmra.mrb[0].mxu0 %v340
    %v668 = vpop.f32.mrb[0].mxu0
    %v669 = vadd.f32 %v550, %v668
    %v670 = vpop.f32.mrb[0].mxu0
    %671 = vmatprep.mubr.f32.mxu0 %v490
    %672 = vmatmul.mubr.f32.gmra.mrb[0].mxu0 %v345
    %v673 = vpop.f32.mrb[0].mxu0
    %v674 = vadd.f32 %v550, %v673
    %v675 = vpop.f32.mrb[0].mxu0
    %676 = vmatprep.mubr.f32.mxu0 %v495
    %677 = vmatmul.mubr.f32.gmra.mrb[0].mxu0 %v350
    %v678 = vpop.f32.mrb[0].mxu0
    %v679 = vadd.f32 %v550, %v678
    %v680 = vpop.f32.mrb[0].mxu0
    %681 = vmatprep.mubr.f32.mxu0 %v500
    %682 = vmatmul.mubr.f32.gmra.mrb[0].mxu0 %v355
    %v683 = vpop.f32.mrb[0].mxu0
    %v684 = vadd.f32 %v550, %v683
    %v685 = vpop.f32.mrb[0].mxu0
    %686 = vmatprep.mubr.f32.mxu0 %v505
    %687 = vmatmul.mubr.f32.gmra.mrb[0].mxu0 %v360
    %v688 = vpop.f32.mrb[0].mxu0
    %v689 = vadd.f32 %v550, %v688
    %v690 = vpop.f32.mrb[0].mxu0
    %691 = vmatprep.mubr.f32.mxu0 %v510
    %692 = vmatmul.mubr.f32.gmra.mrb[0].mxu0 %v365
    %v693 = vpop.f32.mrb[0].mxu0
    %v694 = vadd.f32 %v550, %v693
    %v695 = vpop.f32.mrb[0].mxu0
    %696 = vdwg.mxu0
    %v697 = vmax.f32 %v619, 0.0
    %v698 = vmax.f32 %v624, 0.0
    %v699 = vmax.f32 %v629, 0.0
    %v700 = vmax.f32 %v634, 0.0
    %v701 = vmax.f32 %v639, 0.0
    %v702 = vmax.f32 %v644, 0.0
    %v703 = vmax.f32 %v649, 0.0
    %v704 = vmax.f32 %v654, 0.0
    %v705 = vmax.f32 %v659, 0.0
    %v706 = vmax.f32 %v664, 0.0
    %v707 = vmax.f32 %v669, 0.0
    %v708 = vmax.f32 %v674, 0.0
    %v709 = vmax.f32 %v679, 0.0
    %v710 = vmax.f32 %v684, 0.0
    %v711 = vmax.f32 %v689, 0.0
    %v712 = vmax.f32 %v694, 0.0
    %713 = vmatprep.subr.mxu0 0.0
    %714 = vmatpush1.msra.mxu0 %v697
    %715 = vmatprep.subr.mxu0 0.0
    %716 = vmatpush1.msra.mxu0 %v698
    %717 = vmatprep.subr.mxu0 0.0
    %718 = vmatpush1.msra.mxu0 %v699
    %719 = vmatprep.subr.mxu0 0.0
    %720 = vmatpush1.msra.mxu0 %v700
    %721 = vmatprep.subr.mxu0 0.0
    %722 = vmatpush1.msra.mxu0 %v701
    %723 = vmatprep.subr.mxu0 0.0
    %724 = vmatpush1.msra.mxu0 %v702
    %725 = vmatprep.subr.mxu0 0.0
    %726 = vmatpush1.msra.mxu0 %v703
    %727 = vmatprep.subr.mxu0 0.0
    %728 = vmatpush1.msra.mxu0 %v704
    %729 = vmatprep.subr.mxu0 0.0
    %730 = vmatpush1.msra.mxu0 %v705
    %731 = vmatprep.subr.mxu0 0.0
    %732 = vmatpush1.msra.mxu0 %v706
    %733 = vmatprep.subr.mxu0 0.0
    %734 = vmatpush1.msra.mxu0 %v707
    %735 = vmatprep.subr.mxu0 0.0
    %736 = vmatpush1.msra.mxu0 %v708
    %737 = vmatprep.subr.mxu0 0.0
    %738 = vmatpush1.msra.mxu0 %v709
    %739 = vmatprep.subr.mxu0 0.0
    %740 = vmatpush1.msra.mxu0 %v710
    %741 = vmatprep.subr.mxu0 0.0
    %742 = vmatpush1.msra.mxu0 %v711
    %743 = vmatprep.subr.mxu0 0.0
    %744 = vmatpush1.msra.mxu0 %v712
    %745 = vmatprep.subr.mxu0 0.0
    %746 = vmatpush1.msra.mxu0 0.0
    %747 = vmatprep.subr.mxu0 0.0
    %748 = vmatpush1.msra.mxu0 0.0
    %749 = vmatprep.subr.mxu0 0.0
    %750 = vmatpush1.msra.mxu0 0.0
    %751 = vmatprep.subr.mxu0 0.0
    %752 = vmatpush1.msra.mxu0 0.0
    %753 = vmatprep.subr.mxu0 0.0
    %754 = vmatpush1.msra.mxu0 0.0
    %755 = vmatprep.subr.mxu0 0.0
    %756 = vmatpush1.msra.mxu0 0.0
    %757 = vmatprep.subr.mxu0 0.0
    %758 = vmatpush1.msra.mxu0 0.0
    %759 = vmatprep.subr.mxu0 0.0
    %760 = vmatpush1.msra.mxu0 0.0
    %761 = vmatprep.subr.mxu0 0.0
    %762 = vmatpush1.msra.mxu0 0.0
    %763 = vmatprep.subr.mxu0 0.0
    %764 = vmatpush1.msra.mxu0 0.0
    %765 = vmatprep.subr.mxu0 0.0
    %766 = vmatpush1.msra.mxu0 0.0
    %767 = vmatprep.subr.mxu0 0.0
    %768 = vmatpush1.msra.mxu0 0.0
    %769 = vmatprep.subr.mxu0 0.0
    %770 = vmatpush1.msra.mxu0 0.0
    %771 = vmatprep.subr.mxu0 0.0
    %772 = vmatpush1.msra.mxu0 0.0
    %773 = vmatprep.subr.mxu0 0.0
    %774 = vmatpush1.msra.mxu0 0.0
    %775 = vmatprep.subr.mxu0 0.0
    %776 = vmatpush1.msra.mxu0 0.0
    %777 = vmatprep.mubr.f32.mxu0 0.0
    %778 = vmatmul.mubr.f32.gmra.mrb[0].mxu0 %v168
    %v779 = vpop.f32.mrb[0].mxu0
    %v780 = vadd.f32 0.0, %v779
    %v781 = vpop.f32.mrb[0].mxu0
    %782 = vmatprep.mubr.f32.mxu0 0.0
    %783 = vmatmul.mubr.f32.gmra.mrb[0].mxu0 %v169
    %v784 = vpop.f32.mrb[0].mxu0
    %v785 = vadd.f32 0.0, %v784
    %v786 = vpop.f32.mrb[0].mxu0
    %787 = vmatprep.mubr.f32.mxu0 0.0
    %788 = vmatmul.mubr.f32.gmra.mrb[0].mxu0 %v170
    %v789 = vpop.f32.mrb[0].mxu0
    %v790 = vadd.f32 0.0, %v789
    %v791 = vpop.f32.mrb[0].mxu0
    %792 = vmatprep.mubr.f32.mxu0 0.0
    %793 = vmatmul.mubr.f32.gmra.mrb[0].mxu0 %v171
    %v794 = vpop.f32.mrb[0].mxu0
    %v795 = vadd.f32 0.0, %v794
    %v796 = vpop.f32.mrb[0].mxu0
    %797 = vmatprep.mubr.f32.mxu0 0.0
    %798 = vmatmul.mubr.f32.gmra.mrb[0].mxu0 %v172
    %v799 = vpop.f32.mrb[0].mxu0
    %v800 = vadd.f32 0.0, %v799
    %v801 = vpop.f32.mrb[0].mxu0
    %802 = vmatprep.mubr.f32.mxu0 0.0
    %803 = vmatmul.mubr.f32.gmra.mrb[0].mxu0 %v173
    %v804 = vpop.f32.mrb[0].mxu0
    %v805 = vadd.f32 0.0, %v804
    %v806 = vpop.f32.mrb[0].mxu0
    %807 = vmatprep.mubr.f32.mxu0 0.0
    %808 = vmatmul.mubr.f32.gmra.mrb[0].mxu0 %v174
    %v809 = vpop.f32.mrb[0].mxu0
    %v810 = vadd.f32 0.0, %v809
    %v811 = vpop.f32.mrb[0].mxu0
    %812 = vmatprep.mubr.f32.mxu0 0.0
    %813 = vmatmul.mubr.f32.gmra.mrb[0].mxu0 %v175
    %v814 = vpop.f32.mrb[0].mxu0
    %v815 = vadd.f32 0.0, %v814
    %v816 = vpop.f32.mrb[0].mxu0
    %817 = vmatprep.mubr.f32.mxu0 0.0
    %818 = vmatmul.mubr.f32.gmra.mrb[0].mxu0 %v176
    %v819 = vpop.f32.mrb[0].mxu0
    %v820 = vadd.f32 0.0, %v819
    %v821 = vpop.f32.mrb[0].mxu0
    %822 = vmatprep.mubr.f32.mxu0 0.0
    %823 = vmatmul.mubr.f32.gmra.mrb[0].mxu0 %v177
    %v824 = vpop.f32.mrb[0].mxu0
    %v825 = vadd.f32 0.0, %v824
    %v826 = vpop.f32.mrb[0].mxu0
    %827 = vmatprep.mubr.f32.mxu0 0.0
    %828 = vmatmul.mubr.f32.gmra.mrb[0].mxu0 %v178
    %v829 = vpop.f32.mrb[0].mxu0
    %v830 = vadd.f32 0.0, %v829
    %v831 = vpop.f32.mrb[0].mxu0
    %832 = vmatprep.mubr.f32.mxu0 0.0
    %833 = vmatmul.mubr.f32.gmra.mrb[0].mxu0 %v179
    %v834 = vpop.f32.mrb[0].mxu0
    %v835 = vadd.f32 0.0, %v834
    %v836 = vpop.f32.mrb[0].mxu0
    %837 = vmatprep.mubr.f32.mxu0 0.0
    %838 = vmatmul.mubr.f32.gmra.mrb[0].mxu0 %v180
    %v839 = vpop.f32.mrb[0].mxu0
    %v840 = vadd.f32 0.0, %v839
    %v841 = vpop.f32.mrb[0].mxu0
    %842 = vmatprep.mubr.f32.mxu0 0.0
    %843 = vmatmul.mubr.f32.gmra.mrb[0].mxu0 %v181
    %v844 = vpop.f32.mrb[0].mxu0
    %v845 = vadd.f32 0.0, %v844
    %v846 = vpop.f32.mrb[0].mxu0
    %847 = vmatprep.mubr.f32.mxu0 0.0
    %848 = vmatmul.mubr.f32.gmra.mrb[0].mxu0 %v182
    %v849 = vpop.f32.mrb[0].mxu0
    %v850 = vadd.f32 0.0, %v849
    %v851 = vpop.f32.mrb[0].mxu0
    %852 = vmatprep.mubr.f32.mxu0 0.0
    %853 = vmatmul.mubr.f32.gmra.mrb[0].mxu0 %v183
    %v854 = vpop.f32.mrb[0].mxu0
    %v855 = vadd.f32 0.0, %v854
    %v856 = vpop.f32.mrb[0].mxu0
    %857 = vdwg.mxu0
    %v858 = vld [vmem:[#allocation11] sm:$0xff]
    %v859 = vld [vmem:[#allocation11 + $0x8] sm:$0xff]
    %v860 = vld [vmem:[#allocation11 + $0x10] sm:$0xff]
    %v861 = vld [vmem:[#allocation11 + $0x18] sm:$0xff]
    %v862 = vld [vmem:[#allocation11 + $0x20] sm:$0xff]
    %v863 = vld [vmem:[#allocation11 + $0x28] sm:$0xff]
    %v864 = vld [vmem:[#allocation11 + $0x30] sm:$0xff]
    %v865 = vld [vmem:[#allocation11 + $0x38] sm:$0xff]
    %v866 = vld [vmem:[#allocation11 + $0x40] sm:$0xff]
    %v867 = vld [vmem:[#allocation11 + $0x48] sm:$0xff]
    %v868 = vld [vmem:[#allocation11 + $0x50] sm:$0xff]
    %v869 = vld [vmem:[#allocation11 + $0x58] sm:$0xff]
    %v870 = vld [vmem:[#allocation11 + $0x60] sm:$0xff]
    %v871 = vld [vmem:[#allocation11 + $0x68] sm:$0xff]
    %v872 = vld [vmem:[#allocation11 + $0x70] sm:$0xff]
    %v873 = vld [vmem:[#allocation11 + $0x78] sm:$0xff]
    %v874 = vld [vmem:[#allocation11 + $0x80] sm:$0xff]
    %v875 = vld [vmem:[#allocation11 + $0x88] sm:$0xff]
    %v876 = vld [vmem:[#allocation11 + $0x90] sm:$0xff]
    %v877 = vld [vmem:[#allocation11 + $0x98] sm:$0xff]
    %v878 = vld [vmem:[#allocation11 + $0xa0] sm:$0xff]
    %v879 = vld [vmem:[#allocation11 + $0xa8] sm:$0xff]
    %v880 = vld [vmem:[#allocation11 + $0xb0] sm:$0xff]
    %v881 = vld [vmem:[#allocation11 + $0xb8] sm:$0xff]
    %v882 = vld [vmem:[#allocation11 + $0xc0] sm:$0xff]
    %v883 = vld [vmem:[#allocation11 + $0xc8] sm:$0xff]
    %v884 = vld [vmem:[#allocation11 + $0xd0] sm:$0xff]
    %v885 = vld [vmem:[#allocation11 + $0xd8] sm:$0xff]
    %v886 = vld [vmem:[#allocation11 + $0xe0] sm:$0xff]
    %v887 = vld [vmem:[#allocation11 + $0xe8] sm:$0xff]
    %v888 = vld [vmem:[#allocation11 + $0xf0] sm:$0xff]
    %v889 = vld [vmem:[#allocation11 + $0xf8] sm:$0xff]
    %v890 = vld [vmem:[%s8] sm:$0x1]
    %v892 = vlaneseq
    %v893 = vshrl.u32 %v892, 7
    %v894 = vsub.s32 0, %v893
    %v895 = vrot.slane %v890, %v894
    %897 = vmatprep.subr.mxu0 0.0
    %898 = vmatpush1.msra.mxu0 %v858
    %899 = vmatprep.subr.mxu0 0.0
    %900 = vmatpush1.msra.mxu0 %v859
    %901 = vmatprep.subr.mxu0 0.0
    %902 = vmatpush1.msra.mxu0 %v860
    %903 = vmatprep.subr.mxu0 0.0
    %904 = vmatpush1.msra.mxu0 %v861
    %905 = vmatprep.subr.mxu0 0.0
    %906 = vmatpush1.msra.mxu0 %v862
    %907 = vmatprep.subr.mxu0 0.0
    %908 = vmatpush1.msra.mxu0 %v863
    %909 = vmatprep.subr.mxu0 0.0
    %910 = vmatpush1.msra.mxu0 %v864
    %911 = vmatprep.subr.mxu0 0.0
    %912 = vmatpush1.msra.mxu0 %v865
    %913 = vmatprep.subr.mxu0 0.0
    %914 = vmatpush1.msra.mxu0 %v866
    %915 = vmatprep.subr.mxu0 0.0
    %916 = vmatpush1.msra.mxu0 %v867
    %917 = vmatprep.subr.mxu0 0.0
    %918 = vmatpush1.msra.mxu0 %v868
    %919 = vmatprep.subr.mxu0 0.0
    %920 = vmatpush1.msra.mxu0 %v869
    %921 = vmatprep.subr.mxu0 0.0
    %922 = vmatpush1.msra.mxu0 %v870
    %923 = vmatprep.subr.mxu0 0.0
    %924 = vmatpush1.msra.mxu0 %v871
    %925 = vmatprep.subr.mxu0 0.0
    %926 = vmatpush1.msra.mxu0 %v872
    %927 = vmatprep.subr.mxu0 0.0
    %928 = vmatpush1.msra.mxu0 %v873
    %929 = vmatprep.subr.mxu0 0.0
    %930 = vmatpush1.msra.mxu0 %v874
    %931 = vmatprep.subr.mxu0 0.0
    %932 = vmatpush1.msra.mxu0 %v875
    %933 = vmatprep.subr.mxu0 0.0
    %934 = vmatpush1.msra.mxu0 %v876
    %935 = vmatprep.subr.mxu0 0.0
    %936 = vmatpush1.msra.mxu0 %v877
    %937 = vmatprep.subr.mxu0 0.0
    %938 = vmatpush1.msra.mxu0 %v878
    %939 = vmatprep.subr.mxu0 0.0
    %940 = vmatpush1.msra.mxu0 %v879
    %941 = vmatprep.subr.mxu0 0.0
    %942 = vmatpush1.msra.mxu0 %v880
    %943 = vmatprep.subr.mxu0 0.0
    %944 = vmatpush1.msra.mxu0 %v881
    %945 = vmatprep.subr.mxu0 0.0
    %946 = vmatpush1.msra.mxu0 %v882
    %947 = vmatprep.subr.mxu0 0.0
    %948 = vmatpush1.msra.mxu0 %v883
    %949 = vmatprep.subr.mxu0 0.0
    %950 = vmatpush1.msra.mxu0 %v884
    %951 = vmatprep.subr.mxu0 0.0
    %952 = vmatpush1.msra.mxu0 %v885
    %953 = vmatprep.subr.mxu0 0.0
    %954 = vmatpush1.msra.mxu0 %v886
    %955 = vmatprep.subr.mxu0 0.0
    %956 = vmatpush1.msra.mxu0 %v887
    %957 = vmatprep.subr.mxu0 0.0
    %958 = vmatpush1.msra.mxu0 %v888
    %959 = vmatprep.subr.mxu0 0.0
    %960 = vmatpush1.msra.mxu0 %v889
    %961 = vmatprep.mubr.f32.mxu0 %v780
    %962 = vmatmul.mubr.f32.gmra.mrb[0].mxu0 %v697
    %v963 = vpop.f32.mrb[0].mxu0
    %v964 = vadd.f32 %v895, %v963
    %v965 = vpop.f32.mrb[0].mxu0
    %966 = vmatprep.mubr.f32.mxu0 %v785
    %967 = vmatmul.mubr.f32.gmra.mrb[0].mxu0 %v698
    %v968 = vpop.f32.mrb[0].mxu0
    %v969 = vadd.f32 %v895, %v968
    %v970 = vpop.f32.mrb[0].mxu0
    %971 = vmatprep.mubr.f32.mxu0 %v790
    %972 = vmatmul.mubr.f32.gmra.mrb[0].mxu0 %v699
    %v973 = vpop.f32.mrb[0].mxu0
    %v974 = vadd.f32 %v895, %v973
    %v975 = vpop.f32.mrb[0].mxu0
    %976 = vmatprep.mubr.f32.mxu0 %v795
    %977 = vmatmul.mubr.f32.gmra.mrb[0].mxu0 %v700
    %v978 = vpop.f32.mrb[0].mxu0
    %v979 = vadd.f32 %v895, %v978
    %v980 = vpop.f32.mrb[0].mxu0
    %981 = vmatprep.mubr.f32.mxu0 %v800
    %982 = vmatmul.mubr.f32.gmra.mrb[0].mxu0 %v701
    %v983 = vpop.f32.mrb[0].mxu0
    %v984 = vadd.f32 %v895, %v983
    %v985 = vpop.f32.mrb[0].mxu0
    %986 = vmatprep.mubr.f32.mxu0 %v805
    %987 = vmatmul.mubr.f32.gmra.mrb[0].mxu0 %v702
    %v988 = vpop.f32.mrb[0].mxu0
    %v989 = vadd.f32 %v895, %v988
    %v990 = vpop.f32.mrb[0].mxu0
    %991 = vmatprep.mubr.f32.mxu0 %v810
    %992 = vmatmul.mubr.f32.gmra.mrb[0].mxu0 %v703
    %v993 = vpop.f32.mrb[0].mxu0
    %v994 = vadd.f32 %v895, %v993
    %v995 = vpop.f32.mrb[0].mxu0
    %996 = vmatprep.mubr.f32.mxu0 %v815
    %997 = vmatmul.mubr.f32.gmra.mrb[0].mxu0 %v704
    %v998 = vpop.f32.mrb[0].mxu0
    %v999 = vadd.f32 %v895, %v998
    %v1000 = vpop.f32.mrb[0].mxu0
    %1001 = vmatprep.mubr.f32.mxu0 %v820
    %1002 = vmatmul.mubr.f32.gmra.mrb[0].mxu0 %v705
    %v1003 = vpop.f32.mrb[0].mxu0
    %v1004 = vadd.f32 %v895, %v1003
    %v1005 = vpop.f32.mrb[0].mxu0
    %1006 = vmatprep.mubr.f32.mxu0 %v825
    %1007 = vmatmul.mubr.f32.gmra.mrb[0].mxu0 %v706
    %v1008 = vpop.f32.mrb[0].mxu0
    %v1009 = vadd.f32 %v895, %v1008
    %v1010 = vpop.f32.mrb[0].mxu0
    %1011 = vmatprep.mubr.f32.mxu0 %v830
    %1012 = vmatmul.mubr.f32.gmra.mrb[0].mxu0 %v707
    %v1013 = vpop.f32.mrb[0].mxu0
    %v1014 = vadd.f32 %v895, %v1013
    %v1015 = vpop.f32.mrb[0].mxu0
    %1016 = vmatprep.mubr.f32.mxu0 %v835
    %1017 = vmatmul.mubr.f32.gmra.mrb[0].mxu0 %v708
    %v1018 = vpop.f32.mrb[0].mxu0
    %v1019 = vadd.f32 %v895, %v1018
    %v1020 = vpop.f32.mrb[0].mxu0
    %1021 = vmatprep.mubr.f32.mxu0 %v840
    %1022 = vmatmul.mubr.f32.gmra.mrb[0].mxu0 %v709
    %v1023 = vpop.f32.mrb[0].mxu0
    %v1024 = vadd.f32 %v895, %v1023
    %v1025 = vpop.f32.mrb[0].mxu0
    %1026 = vmatprep.mubr.f32.mxu0 %v845
    %1027 = vmatmul.mubr.f32.gmra.mrb[0].mxu0 %v710
    %v1028 = vpop.f32.mrb[0].mxu0
    %v1029 = vadd.f32 %v895, %v1028
    %v1030 = vpop.f32.mrb[0].mxu0
    %1031 = vmatprep.mubr.f32.mxu0 %v850
    %1032 = vmatmul.mubr.f32.gmra.mrb[0].mxu0 %v711
    %v1033 = vpop.f32.mrb[0].mxu0
    %v1034 = vadd.f32 %v895, %v1033
    %v1035 = vpop.f32.mrb[0].mxu0
    %1036 = vmatprep.mubr.f32.mxu0 %v855
    %1037 = vmatmul.mubr.f32.gmra.mrb[0].mxu0 %v712
    %v1038 = vpop.f32.mrb[0].mxu0
    %v1039 = vadd.f32 %v895, %v1038
    %v1040 = vpop.f32.mrb[0].mxu0
    %1041 = vdwg.mxu0
    %v1042 = vmax.f32 %v964, 0.0
    %v1043 = vmax.f32 %v969, 0.0
    %v1044 = vmax.f32 %v974, 0.0
    %v1045 = vmax.f32 %v979, 0.0
    %v1046 = vmax.f32 %v984, 0.0
    %v1047 = vmax.f32 %v989, 0.0
    %v1048 = vmax.f32 %v994, 0.0
    %v1049 = vmax.f32 %v999, 0.0
    %v1050 = vmax.f32 %v1004, 0.0
    %v1051 = vmax.f32 %v1009, 0.0
    %v1052 = vmax.f32 %v1014, 0.0
    %v1053 = vmax.f32 %v1019, 0.0
    %v1054 = vmax.f32 %v1024, 0.0
    %v1055 = vmax.f32 %v1029, 0.0
    %v1056 = vmax.f32 %v1034, 0.0
    %v1057 = vmax.f32 %v1039, 0.0
    %v1058 = vld [vmem:[#allocation5] sm:$0xff]
    %1059 = vmatprep.subr.mxu0 0.0
    %1060 = vmatpush1.msra.mxu0 %v1042
    %1061 = vmatprep.subr.mxu0 0.0
    %1062 = vmatpush1.msra.mxu0 %v1043
    %1063 = vmatprep.subr.mxu0 0.0
    %1064 = vmatpush1.msra.mxu0 %v1044
    %1065 = vmatprep.subr.mxu0 0.0
    %1066 = vmatpush1.msra.mxu0 %v1045
    %1067 = vmatprep.subr.mxu0 0.0
    %1068 = vmatpush1.msra.mxu0 %v1046
    %1069 = vmatprep.subr.mxu0 0.0
    %1070 = vmatpush1.msra.mxu0 %v1047
    %1071 = vmatprep.subr.mxu0 0.0
    %1072 = vmatpush1.msra.mxu0 %v1048
    %1073 = vmatprep.subr.mxu0 0.0
    %1074 = vmatpush1.msra.mxu0 %v1049
    %1075 = vmatprep.subr.mxu0 0.0
    %1076 = vmatpush1.msra.mxu0 %v1050
    %1077 = vmatprep.subr.mxu0 0.0
    %1078 = vmatpush1.msra.mxu0 %v1051
    %1079 = vmatprep.subr.mxu0 0.0
    %1080 = vmatpush1.msra.mxu0 %v1052
    %1081 = vmatprep.subr.mxu0 0.0
    %1082 = vmatpush1.msra.mxu0 %v1053
    %1083 = vmatprep.subr.mxu0 0.0
    %1084 = vmatpush1.msra.mxu0 %v1054
    %1085 = vmatprep.subr.mxu0 0.0
    %1086 = vmatpush1.msra.mxu0 %v1055
    %1087 = vmatprep.subr.mxu0 0.0
    %1088 = vmatpush1.msra.mxu0 %v1056
    %1089 = vmatprep.subr.mxu0 0.0
    %1090 = vmatpush1.msra.mxu0 %v1057
    %1091 = vmatprep.subr.mxu0 0.0
    %1092 = vmatpush1.msra.mxu0 0.0
    %1093 = vmatprep.subr.mxu0 0.0
    %1094 = vmatpush1.msra.mxu0 0.0
    %1095 = vmatprep.subr.mxu0 0.0
    %1096 = vmatpush1.msra.mxu0 0.0
    %1097 = vmatprep.subr.mxu0 0.0
    %1098 = vmatpush1.msra.mxu0 0.0
    %1099 = vmatprep.subr.mxu0 0.0
    %1100 = vmatpush1.msra.mxu0 0.0
    %1101 = vmatprep.subr.mxu0 0.0
    %1102 = vmatpush1.msra.mxu0 0.0
    %1103 = vmatprep.subr.mxu0 0.0
    %1104 = vmatpush1.msra.mxu0 0.0
    %1105 = vmatprep.subr.mxu0 0.0
    %1106 = vmatpush1.msra.mxu0 0.0
    %1107 = vmatprep.subr.mxu0 0.0
    %1108 = vmatpush1.msra.mxu0 0.0
    %1109 = vmatprep.subr.mxu0 0.0
    %1110 = vmatpush1.msra.mxu0 0.0
    %1111 = vmatprep.subr.mxu0 0.0
    %1112 = vmatpush1.msra.mxu0 0.0
    %1113 = vmatprep.subr.mxu0 0.0
    %1114 = vmatpush1.msra.mxu0 0.0
    %1115 = vmatprep.subr.mxu0 0.0
    %1116 = vmatpush1.msra.mxu0 0.0
    %1117 = vmatprep.subr.mxu0 0.0
    %1118 = vmatpush1.msra.mxu0 0.0
    %1119 = vmatprep.subr.mxu0 0.0
    %1120 = vmatpush1.msra.mxu0 0.0
    %1121 = vmatprep.subr.mxu0 0.0
    %1122 = vmatpush1.msra.mxu0 0.0
    %1123 = vmatprep.mubr.f32.mxu0 0.0
    %1124 = vmatmul.mubr.f32.gmra.mrb[0].mxu0 %v1058
    %v1125 = vpop.f32.mrb[0].mxu0
    %v1126 = vadd.f32 0.0, %v1125
    %v1127 = vpop.f32.mrb[0].mxu0
    %1128 = vdwg.mxu0
    %v1129 = vld [vmem:[#allocation13] sm:$0xff]
    %v1130 = vld [vmem:[#allocation13 + $0x8] sm:$0xff]
    %v1131 = vld [vmem:[#allocation13 + $0x10] sm:$0xff]
    %v1132 = vld [vmem:[#allocation13 + $0x18] sm:$0xff]
    %v1133 = vld [vmem:[#allocation13 + $0x20] sm:$0xff]
    %v1134 = vld [vmem:[#allocation13 + $0x28] sm:$0xff]
    %v1135 = vld [vmem:[#allocation13 + $0x30] sm:$0xff]
    %v1136 = vld [vmem:[#allocation13 + $0x38] sm:$0xff]
    %v1137 = vld [vmem:[#allocation13 + $0x40] sm:$0xff]
    %v1138 = vld [vmem:[#allocation13 + $0x48] sm:$0xff]
    %v1139 = vld [vmem:[#allocation13 + $0x50] sm:$0xff]
    %v1140 = vld [vmem:[#allocation13 + $0x58] sm:$0xff]
    %v1141 = vld [vmem:[#allocation13 + $0x60] sm:$0xff]
    %v1142 = vld [vmem:[#allocation13 + $0x68] sm:$0xff]
    %v1143 = vld [vmem:[#allocation13 + $0x70] sm:$0xff]
    %v1144 = vld [vmem:[#allocation13 + $0x78] sm:$0xff]
    %v1145 = vld [vmem:[%s10] sm:$0x1]
    %v1147 = vlaneseq
    %v1148 = vshrl.u32 %v1147, 7
    %v1149 = vsub.s32 0, %v1148
    %v1150 = vrot.slane %v1145, %v1149
    %1152 = vmatprep.subr.mxu0 0.0
    %1153 = vmatpush1.msra.mxu0 %v1129
    %1154 = vmatprep.subr.mxu0 0.0
    %1155 = vmatpush1.msra.mxu0 %v1130
    %1156 = vmatprep.subr.mxu0 0.0
    %1157 = vmatpush1.msra.mxu0 %v1131
    %1158 = vmatprep.subr.mxu0 0.0
    %1159 = vmatpush1.msra.mxu0 %v1132
    %1160 = vmatprep.subr.mxu0 0.0
    %1161 = vmatpush1.msra.mxu0 %v1133
    %1162 = vmatprep.subr.mxu0 0.0
    %1163 = vmatpush1.msra.mxu0 %v1134
    %1164 = vmatprep.subr.mxu0 0.0
    %1165 = vmatpush1.msra.mxu0 %v1135
    %1166 = vmatprep.subr.mxu0 0.0
    %1167 = vmatpush1.msra.mxu0 %v1136
    %1168 = vmatprep.subr.mxu0 0.0
    %1169 = vmatpush1.msra.mxu0 %v1137
    %1170 = vmatprep.subr.mxu0 0.0
    %1171 = vmatpush1.msra.mxu0 %v1138
    %1172 = vmatprep.subr.mxu0 0.0
    %1173 = vmatpush1.msra.mxu0 %v1139
    %1174 = vmatprep.subr.mxu0 0.0
    %1175 = vmatpush1.msra.mxu0 %v1140
    %1176 = vmatprep.subr.mxu0 0.0
    %1177 = vmatpush1.msra.mxu0 %v1141
    %1178 = vmatprep.subr.mxu0 0.0
    %1179 = vmatpush1.msra.mxu0 %v1142
    %1180 = vmatprep.subr.mxu0 0.0
    %1181 = vmatpush1.msra.mxu0 %v1143
    %1182 = vmatprep.subr.mxu0 0.0
    %1183 = vmatpush1.msra.mxu0 %v1144
    %1184 = vmatprep.subr.mxu0 0.0
    %1185 = vmatpush1.msra.mxu0 0.0
    %1186 = vmatprep.subr.mxu0 0.0
    %1187 = vmatpush1.msra.mxu0 0.0
    %1188 = vmatprep.subr.mxu0 0.0
    %1189 = vmatpush1.msra.mxu0 0.0
    %1190 = vmatprep.subr.mxu0 0.0
    %1191 = vmatpush1.msra.mxu0 0.0
    %1192 = vmatprep.subr.mxu0 0.0
    %1193 = vmatpush1.msra.mxu0 0.0
    %1194 = vmatprep.subr.mxu0 0.0
    %1195 = vmatpush1.msra.mxu0 0.0
    %1196 = vmatprep.subr.mxu0 0.0
    %1197 = vmatpush1.msra.mxu0 0.0
    %1198 = vmatprep.subr.mxu0 0.0
    %1199 = vmatpush1.msra.mxu0 0.0
    %1200 = vmatprep.subr.mxu0 0.0
    %1201 = vmatpush1.msra.mxu0 0.0
    %1202 = vmatprep.subr.mxu0 0.0
    %1203 = vmatpush1.msra.mxu0 0.0
    %1204 = vmatprep.subr.mxu0 0.0
    %1205 = vmatpush1.msra.mxu0 0.0
    %1206 = vmatprep.subr.mxu0 0.0
    %1207 = vmatpush1.msra.mxu0 0.0
    %1208 = vmatprep.subr.mxu0 0.0
    %1209 = vmatpush1.msra.mxu0 0.0
    %1210 = vmatprep.subr.mxu0 0.0
    %1211 = vmatpush1.msra.mxu0 0.0
    %1212 = vmatprep.subr.mxu0 0.0
    %1213 = vmatpush1.msra.mxu0 0.0
    %1214 = vmatprep.subr.mxu0 0.0
    %1215 = vmatpush1.msra.mxu0 0.0
    %1216 = vmatprep.mubr.f32.mxu0 0.0
    %1217 = vmatmul.mubr.f32.gmra.mrb[0].mxu0 %v1126
    %v1218 = vpop.f32.mrb[0].mxu0
    %v1219 = vadd.f32 %v1150, %v1218
    %v1220 = vpop.f32.mrb[0].mxu0
    %1221 = vdwg.mxu0
    %v1222 = vmax.f32 %v1219, 0.0
    %v1223 = vld [vmem:[#allocation14] sm:$0xff]
    %v1224 = vld [vmem:[#allocation14 + $0x8] sm:$0xff]
    %v1225 = vld [vmem:[#allocation14 + $0x10] sm:$0xff]
    %v1226 = vld [vmem:[#allocation14 + $0x18] sm:$0xff]
    %v1227 = vld [vmem:[#allocation14 + $0x20] sm:$0xff]
    %v1228 = vld [vmem:[#allocation14 + $0x28] sm:$0xff]
    %v1229 = vld [vmem:[#allocation14 + $0x30] sm:$0xff]
    %v1230 = vld [vmem:[#allocation14 + $0x38] sm:$0xff]
    %v1231 = vld [vmem:[#allocation14 + $0x40] sm:$0xff]
    %v1232 = vld [vmem:[#allocation14 + $0x48] sm:$0xff]
    %v1233 = vld [vmem:[#allocation14 + $0x50] sm:$0xff]
    %v1234 = vld [vmem:[#allocation14 + $0x58] sm:$0xff]
    %v1235 = vld [vmem:[#allocation14 + $0x60] sm:$0xff]
    %v1236 = vld [vmem:[#allocation14 + $0x68] sm:$0xff]
    %v1237 = vld [vmem:[#allocation14 + $0x70] sm:$0xff]
    %v1238 = vld [vmem:[#allocation14 + $0x78] sm:$0xff]
    %v1239 = vld [vmem:[%s12] sm:$0x1]
    %v1241 = vlaneseq
    %v1242 = vshrl.u32 %v1241, 7
    %v1243 = vsub.s32 0, %v1242
    %v1244 = vrot.slane %v1239, %v1243
    %1246 = vmatprep.subr.mxu0 0.0
    %1247 = vmatpush1.msra.mxu0 %v1223
    %1248 = vmatprep.subr.mxu0 0.0
    %1249 = vmatpush1.msra.mxu0 %v1224
    %1250 = vmatprep.subr.mxu0 0.0
    %1251 = vmatpush1.msra.mxu0 %v1225
    %1252 = vmatprep.subr.mxu0 0.0
    %1253 = vmatpush1.msra.mxu0 %v1226
    %1254 = vmatprep.subr.mxu0 0.0
    %1255 = vmatpush1.msra.mxu0 %v1227
    %1256 = vmatprep.subr.mxu0 0.0
    %1257 = vmatpush1.msra.mxu0 %v1228
    %1258 = vmatprep.subr.mxu0 0.0
    %1259 = vmatpush1.msra.mxu0 %v1229
    %1260 = vmatprep.subr.mxu0 0.0
    %1261 = vmatpush1.msra.mxu0 %v1230
    %1262 = vmatprep.subr.mxu0 0.0
    %1263 = vmatpush1.msra.mxu0 %v1231
    %1264 = vmatprep.subr.mxu0 0.0
    %1265 = vmatpush1.msra.mxu0 %v1232
    %1266 = vmatprep.subr.mxu0 0.0
    %1267 = vmatpush1.msra.mxu0 %v1233
    %1268 = vmatprep.subr.mxu0 0.0
    %1269 = vmatpush1.msra.mxu0 %v1234
    %1270 = vmatprep.subr.mxu0 0.0
    %1271 = vmatpush1.msra.mxu0 %v1235
    %1272 = vmatprep.subr.mxu0 0.0
    %1273 = vmatpush1.msra.mxu0 %v1236
    %1274 = vmatprep.subr.mxu0 0.0
    %1275 = vmatpush1.msra.mxu0 %v1237
    %1276 = vmatprep.subr.mxu0 0.0
    %1277 = vmatpush1.msra.mxu0 %v1238
    %1278 = vmatprep.subr.mxu0 0.0
    %1279 = vmatpush1.msra.mxu0 0.0
    %1280 = vmatprep.subr.mxu0 0.0
    %1281 = vmatpush1.msra.mxu0 0.0
    %1282 = vmatprep.subr.mxu0 0.0
    %1283 = vmatpush1.msra.mxu0 0.0
    %1284 = vmatprep.subr.mxu0 0.0
    %1285 = vmatpush1.msra.mxu0 0.0
    %1286 = vmatprep.subr.mxu0 0.0
    %1287 = vmatpush1.msra.mxu0 0.0
    %1288 = vmatprep.subr.mxu0 0.0
    %1289 = vmatpush1.msra.mxu0 0.0
    %1290 = vmatprep.subr.mxu0 0.0
    %1291 = vmatpush1.msra.mxu0 0.0
    %1292 = vmatprep.subr.mxu0 0.0
    %1293 = vmatpush1.msra.mxu0 0.0
    %1294 = vmatprep.subr.mxu0 0.0
    %1295 = vmatpush1.msra.mxu0 0.0
    %1296 = vmatprep.subr.mxu0 0.0
    %1297 = vmatpush1.msra.mxu0 0.0
    %1298 = vmatprep.subr.mxu0 0.0
    %1299 = vmatpush1.msra.mxu0 0.0
    %1300 = vmatprep.subr.mxu0 0.0
    %1301 = vmatpush1.msra.mxu0 0.0
    %1302 = vmatprep.subr.mxu0 0.0
    %1303 = vmatpush1.msra.mxu0 0.0
    %1304 = vmatprep.subr.mxu0 0.0
    %1305 = vmatpush1.msra.mxu0 0.0
    %1306 = vmatprep.subr.mxu0 0.0
    %1307 = vmatpush1.msra.mxu0 0.0
    %1308 = vmatprep.subr.mxu0 0.0
    %1309 = vmatpush1.msra.mxu0 0.0
    %1310 = vmatprep.mubr.f32.mxu0 0.0
    %1311 = vmatmul.mubr.f32.gmra.mrb[0].mxu0 %v1222
    %v1312 = vpop.f32.mrb[0].mxu0
    %v1313 = vadd.f32 %v1244, %v1312
    %v1314 = vpop.f32.mrb[0].mxu0
    %1315 = vdwg.mxu0
    %1316 = vmax.xlane.f32.xlu0 %v1313
    %v1317 = vpop.xlane.xlu0 %1316
    %v1318 = vsub.f32 %v1313, %v1317
    %v1319 = vmul.f32 %v1318, 1.442695
    %v1320 = vpow.pop %v1319
    %1321 = vadd.xlane.f32.xlu0 %v1320
    %v1322 = vpop.xlane.xlu0 %1321
    %v1323 = vlog2.pop %v1322
    %v1324 = vmul.f32 %v1323, 0.6931472
    %v1325 = vsub.f32 %v1318, %v1324
    %1326 = vst [vmem:[#allocation16] sm:$0xff] %v1325
    // Predicated region
    $region86: #{tpu_custom_call.1} parent=1 // pred_check
      _
    $region87: #{tpu_custom_call.1} parent=1 // pred_check_branch
      %1328 = sbr.rel (0) target = $region89
    $region88: #{tpu_custom_call.1} parent=1 // pred_region
      %s1330 = ssub.s32 128, 128
      %1331 = vsyncadd [#allocation4], %s1330
      %s1333 = sshll.u32 [#allocation16], 4
      %s1334 = int_to_ptr.vmem [resolvable:$true] %s1333
      %1336 = dma.vmem_to_hbm [thread:$0]  %s1334, 128, %s13, [#allocation4]
    $region89: #{tpu_custom_call.1} parent=1 // pred_fallthru
      _
    // Predicated region
    $region90: #{tpu_custom_call.1} parent=1 // pred_check
      _
    $region91: #{tpu_custom_call.1} parent=1 // pred_check_branch
      %1338 = sbr.rel (0) target = $region93
    $region92: #{tpu_custom_call.1} parent=1 // pred_region
      %1339 = dma.done [#allocation4], 128
    $region93: #{tpu_custom_call.1} parent=1 // pred_fallthru
      _
    %1340 = vsyncpa [#allocation3], 1
    %1341 = vsyncpa [#allocation6], 1
    %1342 = vsyncpa [#allocation9], 1
    %1343 = vsyncpa [#allocation12], 1
    %1344 = vsyncpa [#allocation15], 1
    %1345 = vsyncpa [#allocation4], 1

</llo_original>
